<compile_context>
chip_gen: v7x
topology: tpu7x:2x2x1
jax: 0.10.0
libtpu: 0.0.40
codegen_flags: <defaults>
</compile_context>

<pallas_src>
import jax
import jax.numpy as jnp
import numpy as np
from jax.experimental import pallas as pl
from jax.experimental.pallas import tpu as pltpu

EMBEDDING_DIM = 32
HEAD_NUM = 4
QKV_DIM = 8
LOGIT_CLIPPING = 10.0
TOPK = 51  # as in the reference module (requires N >= 51)


def reshape_by_heads(x, head_num):
    # x: (B, n, head_num * d) -> (B, head_num, n, d)   (matches the torch helper)
    B, n, hd = x.shape
    d = hd // head_num
    return jnp.transpose(x.reshape(B, n, head_num, d), (0, 2, 1, 3))


# ---------------------------------------------------------------------------
# Pallas kernel
# ---------------------------------------------------------------------------
def decoder_kernel(eln_ref, qf_ref, kT_ref, vT_ref, shk_ref, mask_ref,
                   dist_ref, wq_ref, wc_ref, bc_ref, out_ref):
    BT, P, E = eln_ref.shape
    H = kT_ref.shape[1]
    Dk = kT_ref.shape[2]

    # Wq_last projection on folded (BT*P, E) rows (tiny f32 matmul), + q_first.
    x = eln_ref[...].reshape(BT * P, E)
    q = jnp.dot(x, wq_ref[...], preferred_element_type=jnp.float32)   # (BT*P, H*Dk)
    q = q + qf_ref[...].reshape(BT * P, H * Dk)
    q = q.reshape(BT, P, H * Dk)

    mask = mask_ref[...].astype(jnp.float32)             # (BT, P, Npad); stored bf16
    inv_sqrt_dk = jnp.float32(1.0 / np.sqrt(Dk))

    # Multi-head attention; combine accumulated head by head (no 8-lane concat).
    mh = jnp.zeros((BT, P, E), jnp.float32)
    for h in range(H):                                    # static unroll, H small
        qh = q[:, :, h * Dk:(h + 1) * Dk].astype(jnp.bfloat16)       # (BT, P, Dk)
        kh = kT_ref[:, h]                                 # (BT, Dk, Npad) bf16 ref view
        s = jnp.einsum('bpd,bdn->bpn', qh, kh,
                       preferred_element_type=jnp.float32)           # (BT, P, Npad)
        s = s * inv_sqrt_dk + mask
        s = s - jnp.max(s, axis=-1, keepdims=True)
        e = jnp.exp(s)
        w = (e * pl.reciprocal(jnp.sum(e, axis=-1, keepdims=True), approx=True)
             ).astype(jnp.bfloat16)                       # bf16 LHS for the MXU
        vh = vT_ref[:, h]                                 # (BT, Dk, Npad) bf16 ref view
        ho = jnp.einsum('bpn,bdn->bpd', w, vh,
                        preferred_element_type=jnp.float32)          # (BT, P, Dk)
        mh = mh + jnp.einsum('bpd,de->bpe', ho, wc_ref[h * Dk:(h + 1) * Dk, :],
                             preferred_element_type=jnp.float32)
    mh = mh + bc_ref[...]                                 # (BT, P, E)

    # Single-head-key score (single_head_key pre-transposed: N in lanes, bf16 RHS).
    score = jnp.einsum('bpe,ben->bpn', mh.astype(jnp.bfloat16), shk_ref[...],
                       preferred_element_type=jnp.float32)
    score = score * jnp.float32(1.0 / np.sqrt(E))
    score = LOGIT_CLIPPING * jnp.tanh(score + dist_ref[...])
    score = score + mask
    # No subtract-max here: logits are bounded to [-10, 10] by the tanh clipping and
    # masked / padded entries (<= -9.9e8) underflow exp() to exactly 0 in f32.
    e2 = jnp.exp(score)
    out_ref[...] = e2 * pl.reciprocal(jnp.sum(e2, axis=-1, keepdims=True), approx=True)


# ---------------------------------------------------------------------------
# Wrapper helpers
# ---------------------------------------------------------------------------
def _pad_last(x, n_pad, value=0.0):
    pad = n_pad - x.shape[-1]
    if pad:
        cfg = [(0, 0)] * (x.ndim - 1) + [(0, pad)]
        x = jnp.pad(x, cfg, constant_values=value)
    return x


def _block_bytes(bt, P, n_pad):
    """VMEM bytes of one grid-step's blocks, including (sublane, lane) tile padding."""
    H, Dk, E = HEAD_NUM, QKV_DIM, EMBEDDING_DIM
    f32, bf16 = 4, 2
    sub8 = lambda r: ((r + 7) // 8) * 8
    sub16 = lambda r: ((r + 15) // 16) * 16
    lane = lambda c: ((c + 127) // 128) * 128
    eln = bt * sub8(P) * lane(E) * f32
    qf = bt * sub8(P) * lane(H * Dk) * f32
    kT = bt * H * sub16(Dk) * n_pad * bf16
    vT = kT
    shk = bt * sub16(E) * n_pad * bf16
    msk = bt * sub16(P) * n_pad * bf16
    dst = bt * sub8(P) * n_pad * f32
    out = dst
    return eln + qf + kT + vT + shk + msk + dst + out


def _pick_batch_tile(B, P, n_pad, max_tile=64, budget_bytes=24 * 2**20):
    """Largest batch fold whose double-buffered blocks fit the VMEM budget.
    Prefers a grid of >= 2 (and even) steps so the 'parallel' axis can split
    across TensorCores on multi-core generations (v7x)."""
    candidates = [bt for bt in range(1, min(B, max_tile) + 1)
                  if B % bt == 0 and 2 * _block_bytes(bt, P, n_pad) <= budget_bytes]
    if not candidates:
        return 1

    def key(bt):
        g = B // bt
        return (g >= 2, g % 2 == 0, bt)

    return max(candidates, key=key)


# ---------------------------------------------------------------------------
# One-time precompute (set_kv / set_q1 style) + per-step forward
# ---------------------------------------------------------------------------
def precompute_decoder_state(encoded_nodes, q_first, k, v, wq_last, w_comb, b_comb):
    """Step-invariant layout & precision prep, hoisted out of the decode step:
    transposes to lane-dense layouts, N padding, bf16 casts, weight casts."""
    B, N, E = encoded_nodes.shape
    H, Dk = HEAD_NUM, QKV_DIM
    P = q_first.shape[2]
    N_pad = ((N + 127) // 128) * 128
    kT = _pad_last(jnp.transpose(k, (0, 1, 3, 2)), N_pad).astype(jnp.bfloat16)        # (B,H,Dk,Npad)
    vT = _pad_last(jnp.transpose(v, (0, 1, 3, 2)), N_pad).astype(jnp.bfloat16)        # (B,H,Dk,Npad)
    shk = _pad_last(jnp.transpose(encoded_nodes, (0, 2, 1)), N_pad).astype(jnp.bfloat16)  # (B,E,Npad)
    qf = jnp.transpose(q_first, (0, 2, 1, 3)).reshape(B, P, H * Dk).astype(jnp.float32)
    return dict(
        kT=kT, vT=vT, shk=shk, q_first=qf,
        wq_last=wq_last.astype(jnp.float32),
        w_comb=w_comb.astype(jnp.float32),
        b_comb=b_comb.reshape(1, E).astype(jnp.float32),
        n=int(N), n_pad=int(N_pad))


def tsp_decoder_forward(state, encoded_last_node, cur_dist, ninf_mask, batch_tile=None):
    B, P, E = encoded_last_node.shape
    H, Dk = HEAD_NUM, QKV_DIM
    N, N_pad = state["n"], state["n_pad"]

    # --- cur_dist top-k gather/scatter transform (plain-JAX glue) ---
    # TODO(synk): torch.topk / gather / scatter_ have no clean in-kernel Pallas
    # equivalent; this per-step reshaping is done in JAX outside the kernel.
    _, idx = jax.lax.top_k(-cur_dist, TOPK)            # indices of the 51 smallest dists
    idx = idx[:, :, 1:]                                 # drop the nearest (self) node
    topk_scores = -jnp.log(jnp.take_along_axis(cur_dist, idx, axis=-1))
    b_ix = jnp.arange(B)[:, None, None]
    p_ix = jnp.arange(P)[None, :, None]
    dist_term = (-cur_dist).at[b_ix, p_ix, idx].set(topk_scores).astype(jnp.float32)

    mask_p = _pad_last(ninf_mask, N_pad, value=-1e9).astype(jnp.bfloat16)
    dist_p = _pad_last(dist_term, N_pad)

    if batch_tile is None:
        batch_tile = _pick_batch_tile(B, P, N_pad)
    BT = batch_tile
    assert B % BT == 0
    blk = _block_bytes(BT, P, N_pad)
    vmem_limit = int(min(48 * 2**20, max(2 * blk + 8 * 2**20, 16 * 2**20)))

    grid_spec = pltpu.PrefetchScalarGridSpec(
        num_scalar_prefetch=0,
        grid=(B // BT,),
        in_specs=[
            pl.BlockSpec((BT, P, E), lambda b: (b, 0, 0)),             # encoded_last_node
            pl.BlockSpec((BT, P, H * Dk), lambda b: (b, 0, 0)),        # q_first (flattened)
            pl.BlockSpec((BT, H, Dk, N_pad), lambda b: (b, 0, 0, 0)),  # k^T (bf16)
            pl.BlockSpec((BT, H, Dk, N_pad), lambda b: (b, 0, 0, 0)),  # v^T (bf16)
            pl.BlockSpec((BT, E, N_pad), lambda b: (b, 0, 0)),         # single_head_key (bf16)
            pl.BlockSpec((BT, P, N_pad), lambda b: (b, 0, 0)),         # ninf_mask (bf16, padded)
            pl.BlockSpec((BT, P, N_pad), lambda b: (b, 0, 0)),         # dist_term (f32, padded)
            pl.BlockSpec((E, H * Dk), lambda b: (0, 0)),               # Wq_last
            pl.BlockSpec((H * Dk, E), lambda b: (0, 0)),               # W multi_head_combine
            pl.BlockSpec((1, E), lambda b: (0, 0)),                    # b multi_head_combine
        ],
        out_specs=pl.BlockSpec((BT, P, N_pad), lambda b: (b, 0, 0)),
    )

    probs = pl.pallas_call(
        decoder_kernel,
        out_shape=jax.ShapeDtypeStruct((B, P, N_pad), jnp.float32),
        grid_spec=grid_spec,
        compiler_params=pltpu.CompilerParams(
            dimension_semantics=("parallel",),
            vmem_limit_bytes=vmem_limit),
    )(encoded_last_node.astype(jnp.float32), state["q_first"], state["kT"],
      state["vT"], state["shk"], mask_p, dist_p,
      state["wq_last"], state["w_comb"], state["b_comb"])
    return probs[:, :, :N]


# ---------------------------------------------------------------------------
# Pure-JAX reference (f32), mirroring the PyTorch module
# ---------------------------------------------------------------------------
def reference_forward(encoded_last_node, q_first, k, v, encoded_nodes,
                      ninf_mask, cur_dist, wq_last, w_comb, b_comb):
    H, Dk, E = HEAD_NUM, QKV_DIM, EMBEDDING_DIM
    B, P, N = cur_dist.shape
    q_last = reshape_by_heads(encoded_last_node @ wq_last, H)
    q = q_first + q_last
    score = jnp.einsum('bhpd,bhnd->bhpn', q, k) / jnp.sqrt(jnp.float32(Dk))
    score = score + ninf_mask[:, None, :, :]
    w = jax.nn.softmax(score, axis=-1)
    out = jnp.einsum('bhpn,bhnd->bhpd', w, v)
    out_concat = jnp.transpose(out, (0, 2, 1, 3)).reshape(B, P, H * Dk)
    mh = out_concat @ w_comb + b_comb
    sh_score = jnp.einsum('bpe,bne->bpn', mh, encoded_nodes) / jnp.sqrt(jnp.float32(E))
    _, idx = jax.lax.top_k(-cur_dist, TOPK)
    idx = idx[:, :, 1:]
    topk_scores = -jnp.log(jnp.take_along_axis(cur_dist, idx, axis=-1))
    b_ix = jnp.arange(B)[:, None, None]
    p_ix = jnp.arange(P)[None, :, None]
    dist_term = (-cur_dist).at[b_ix, p_ix, idx].set(topk_scores)
    score_clipped = LOGIT_CLIPPING * jnp.tanh(sh_score + dist_term)
    return jax.nn.softmax(score_clipped + ninf_mask, axis=-1)


if __name__ == "__main__":
    B, P, N = 2, 8, 64
    E, H, Dk = EMBEDDING_DIM, HEAD_NUM, QKV_DIM

    key = jax.random.PRNGKey(0)
    keys = jax.random.split(key, 12)

    # Deterministic parameters (stored (in_features, out_features)).
    lim = 1.0 / np.sqrt(E)
    wq_first = jax.random.uniform(keys[0], (E, H * Dk), jnp.float32, -lim, lim)
    wq_last = jax.random.uniform(keys[1], (E, H * Dk), jnp.float32, -lim, lim)
    wk = jax.random.uniform(keys[2], (E, H * Dk), jnp.float32, -lim, lim)
    wv = jax.random.uniform(keys[3], (E, H * Dk), jnp.float32, -lim, lim)
    lim_c = 1.0 / np.sqrt(H * Dk)
    w_comb = jax.random.uniform(keys[4], (H * Dk, E), jnp.float32, -lim_c, lim_c)
    b_comb = jax.random.uniform(keys[5], (E,), jnp.float32, -lim_c, lim_c)

    # Deterministic inputs.
    encoded_nodes = jax.random.normal(keys[6], (B, N, E), jnp.float32)
    encoded_q1 = jax.random.normal(keys[7], (B, P, E), jnp.float32)
    encoded_last_node = jax.random.normal(keys[8], (B, P, E), jnp.float32)
    cur_dist = jax.random.uniform(keys[9], (B, P, N), jnp.float32, 0.05, 2.0)
    mask_bits = jax.random.bernoulli(keys[10], 0.2, (B, P, N))
    ninf_mask = jnp.where(mask_bits, -1e9, 0.0).astype(jnp.float32)

    # set_kv / set_q1 state (mirrors the PyTorch module's stored state).
    k = reshape_by_heads(encoded_nodes @ wk, H)
    v = reshape_by_heads(encoded_nodes @ wv, H)
    q_first = reshape_by_heads(encoded_q1 @ wq_first, H)

    # One-time layout / precision precompute (hoisted out of the decode step).
    state = precompute_decoder_state(encoded_nodes, q_first, k, v,
                                     wq_last, w_comb, b_comb)

    probs = tsp_decoder_forward(state, encoded_last_node, cur_dist, ninf_mask)
    probs = jax.block_until_ready(probs)

    ref = reference_forward(encoded_last_node, q_first, k, v, encoded_nodes,
                            ninf_mask, cur_dist, wq_last, w_comb, b_comb)
    ref = jax.block_until_ready(ref)

    assert probs.shape == (B, P, N)
    # Tolerance accounts for bf16 MXU operands (k/v/single_head_key + downcast LHS)
    # and the approx softmax reciprocal; semantics match the f32 reference.
    np.testing.assert_allclose(np.asarray(probs), np.asarray(ref), atol=2.5e-2, rtol=0)
    print("KERNEL_OK")
</pallas_src>

<mosaic_0001>
module attributes {stable_mosaic.version = 11 : i64} {
  func.func @decoder_kernel(%arg0: i32, %arg1: memref<1x8x32xf32, #tpu.memory_space<vmem>>, %arg2: memref<1x8x32xf32, #tpu.memory_space<vmem>>, %arg3: memref<1x4x8x128xbf16, #tpu.memory_space<vmem>>, %arg4: memref<1x4x8x128xbf16, #tpu.memory_space<vmem>>, %arg5: memref<1x32x128xbf16, #tpu.memory_space<vmem>>, %arg6: memref<1x8x128xbf16, #tpu.memory_space<vmem>>, %arg7: memref<1x8x128xf32, #tpu.memory_space<vmem>>, %arg8: memref<32x32xf32, #tpu.memory_space<vmem>>, %arg9: memref<32x32xf32, #tpu.memory_space<vmem>>, %arg10: memref<1x32xf32, #tpu.memory_space<vmem>>, %arg11: memref<1x8x128xf32, #tpu.memory_space<vmem>>) attributes {dimension_semantics = [#tpu.dimension_semantics<parallel>], iteration_bounds = array<i64: 2>, scalar_prefetch = 0 : i64, scratch_operands = 0 : i64, tpu.core_type = #tpu.core_type<tc>, window_params = [{transform_indices = @transform_0, window_bounds = array<i64: 1, 8, 32>}, {transform_indices = @transform_1, window_bounds = array<i64: 1, 8, 32>}, {transform_indices = @transform_2, window_bounds = array<i64: 1, 4, 8, 128>}, {transform_indices = @transform_3, window_bounds = array<i64: 1, 4, 8, 128>}, {transform_indices = @transform_4, window_bounds = array<i64: 1, 32, 128>}, {transform_indices = @transform_5, window_bounds = array<i64: 1, 8, 128>}, {transform_indices = @transform_6, window_bounds = array<i64: 1, 8, 128>}, {pipeline_mode = #tpu.pipeline_mode<synchronous>, transform_indices = @transform_7, window_bounds = array<i64: 32, 32>}, {pipeline_mode = #tpu.pipeline_mode<synchronous>, transform_indices = @transform_8, window_bounds = array<i64: 32, 32>}, {pipeline_mode = #tpu.pipeline_mode<synchronous>, transform_indices = @transform_9, window_bounds = array<i64: 1, 32>}, {transform_indices = @transform_10, window_bounds = array<i64: 1, 8, 128>}]} {
    %c0 = arith.constant 0 : index
    %c0_0 = arith.constant 0 : index
    %c0_1 = arith.constant 0 : index
    %0 = vector.load %arg1[%c0, %c0_0, %c0_1] : memref<1x8x32xf32, #tpu.memory_space<vmem>>, vector<1x8x32xf32>
    %1 = vector.shape_cast %0 : vector<1x8x32xf32> to vector<8x32xf32>
    %c0_2 = arith.constant 0 : index
    %c0_3 = arith.constant 0 : index
    %2 = vector.load %arg8[%c0_2, %c0_3] : memref<32x32xf32, #tpu.memory_space<vmem>>, vector<32x32xf32>
    %cst = arith.constant dense<0.000000e+00> : vector<8x32xf32>
    %3 = tpu.matmul %1, %2, %cst {dimension_numbers = #tpu.dot_dimension_numbers<[1], [0], [0], [1], [0, 0, 1, 1], [], []>} : vector<8x32xf32>, vector<32x32xf32>, vector<8x32xf32> -> vector<8x32xf32>
    %c0_4 = arith.constant 0 : index
    %c0_5 = arith.constant 0 : index
    %c0_6 = arith.constant 0 : index
    %4 = vector.load %arg2[%c0_4, %c0_5, %c0_6] : memref<1x8x32xf32, #tpu.memory_space<vmem>>, vector<1x8x32xf32>
    %5 = vector.shape_cast %4 : vector<1x8x32xf32> to vector<8x32xf32>
    %6 = arith.addf %3, %5 : vector<8x32xf32>
    %7 = vector.shape_cast %6 : vector<8x32xf32> to vector<1x8x32xf32>
    %c0_7 = arith.constant 0 : index
    %c0_8 = arith.constant 0 : index
    %c0_9 = arith.constant 0 : index
    %8 = vector.load %arg6[%c0_7, %c0_8, %c0_9] : memref<1x8x128xbf16, #tpu.memory_space<vmem>>, vector<1x8x128xbf16>
    %9 = arith.extf %8 : vector<1x8x128xbf16> to vector<1x8x128xf32>
    %cst_10 = arith.constant 0.000000e+00 : f32
    %10 = vector.broadcast %cst_10 : f32 to vector<1x8x32xf32>
    %11 = vector.extract_strided_slice %7 {offsets = [0, 0, 0], sizes = [1, 8, 8], strides = [1, 1, 1]} : vector<1x8x32xf32> to vector<1x8x8xf32>
    %12 = arith.truncf %11 : vector<1x8x8xf32> to vector<1x8x8xbf16>
    %c0_11 = arith.constant 0 : index
    %c0_12 = arith.constant 0 : index
    %c0_13 = arith.constant 0 : index
    %c0_14 = arith.constant 0 : index
    %13 = vector.load %arg3[%c0_11, %c0_12, %c0_13, %c0_14] : memref<1x4x8x128xbf16, #tpu.memory_space<vmem>>, vector<1x1x8x128xbf16>
    %14 = vector.shape_cast %13 : vector<1x1x8x128xbf16> to vector<1x8x128xbf16>
    "tpu.trace_start"() <{level = 10 : i32, message = "bpd,bdn->bpn"}> : () -> ()
    %cst_15 = arith.constant dense<0.000000e+00> : vector<1x8x128xf32>
    %15 = tpu.matmul %12, %14, %cst_15 {dimension_numbers = #tpu.dot_dimension_numbers<[2], [1], [1], [2], [0, 0, 0, 1, 1, 2], [0], [0]>} : vector<1x8x8xbf16>, vector<1x8x128xbf16>, vector<1x8x128xf32> -> vector<1x8x128xf32>
    "tpu.trace_stop"() : () -> ()
    %cst_16 = arith.constant 0.353553385 : f32
    %16 = vector.broadcast %cst_16 : f32 to vector<1x8x128xf32>
    %17 = arith.mulf %15, %16 : vector<1x8x128xf32>
    %18 = arith.addf %17, %9 : vector<1x8x128xf32>
    %cst_17 = arith.constant dense<0xFF800000> : vector<1x8xf32>
    %19 = vector.multi_reduction <maximumf>, %18, %cst_17 [2] : vector<1x8x128xf32> to vector<1x8xf32>
    %20 = vector.shape_cast %19 : vector<1x8xf32> to vector<1x8x1xf32>
    %21 = vector.broadcast %20 : vector<1x8x1xf32> to vector<1x8x128xf32>
    %22 = arith.subf %18, %21 : vector<1x8x128xf32>
    %23 = math.exp %22 : vector<1x8x128xf32>
    %cst_18 = arith.constant dense<0.000000e+00> : vector<1x8xf32>
    %24 = vector.multi_reduction <add>, %23, %cst_18 [2] : vector<1x8x128xf32> to vector<1x8xf32>
    %25 = vector.shape_cast %24 : vector<1x8xf32> to vector<1x8x1xf32>
    %26 = tpu.reciprocal %25 {approx = true} : vector<1x8x1xf32> -> vector<1x8x1xf32>
    %27 = vector.broadcast %26 : vector<1x8x1xf32> to vector<1x8x128xf32>
    %28 = arith.mulf %23, %27 : vector<1x8x128xf32>
    %29 = arith.truncf %28 : vector<1x8x128xf32> to vector<1x8x128xbf16>
    %c0_19 = arith.constant 0 : index
    %c0_20 = arith.constant 0 : index
    %c0_21 = arith.constant 0 : index
    %c0_22 = arith.constant 0 : index
    %30 = vector.load %arg4[%c0_19, %c0_20, %c0_21, %c0_22] : memref<1x4x8x128xbf16, #tpu.memory_space<vmem>>, vector<1x1x8x128xbf16>
    %31 = vector.shape_cast %30 : vector<1x1x8x128xbf16> to vector<1x8x128xbf16>
    "tpu.trace_start"() <{level = 10 : i32, message = "bpn,bdn->bpd"}> : () -> ()
    %cst_23 = arith.constant dense<0.000000e+00> : vector<1x8x8xf32>
    %32 = tpu.matmul %29, %31, %cst_23 {dimension_numbers = #tpu.dot_dimension_numbers<[2], [2], [1], [1], [0, 0, 0, 1, 1, 1], [0], [0]>} : vector<1x8x128xbf16>, vector<1x8x128xbf16>, vector<1x8x8xf32> -> vector<1x8x8xf32>
    "tpu.trace_stop"() : () -> ()
    %c0_24 = arith.constant 0 : index
    %c0_25 = arith.constant 0 : index
    %33 = vector.load %arg9[%c0_24, %c0_25] : memref<32x32xf32, #tpu.memory_space<vmem>>, vector<8x32xf32>
    "tpu.trace_start"() <{level = 10 : i32, message = "bpd,de->bpe"}> : () -> ()
    %cst_26 = arith.constant dense<0.000000e+00> : vector<1x8x32xf32>
    %34 = tpu.matmul %32, %33, %cst_26 {dimension_numbers = #tpu.dot_dimension_numbers<[2], [0], [0, 1], [1], [0, 0, 0, 1, 1, 1], [], []>} : vector<1x8x8xf32>, vector<8x32xf32>, vector<1x8x32xf32> -> vector<1x8x32xf32>
    "tpu.trace_stop"() : () -> ()
    %35 = arith.addf %10, %34 : vector<1x8x32xf32>
    %36 = vector.extract_strided_slice %7 {offsets = [0, 0, 8], sizes = [1, 8, 8], strides = [1, 1, 1]} : vector<1x8x32xf32> to vector<1x8x8xf32>
    %37 = arith.truncf %36 : vector<1x8x8xf32> to vector<1x8x8xbf16>
    %c0_27 = arith.constant 0 : index
    %c1 = arith.constant 1 : index
    %c0_28 = arith.constant 0 : index
    %c0_29 = arith.constant 0 : index
    %38 = vector.load %arg3[%c0_27, %c1, %c0_28, %c0_29] : memref<1x4x8x128xbf16, #tpu.memory_space<vmem>>, vector<1x1x8x128xbf16>
    %39 = vector.shape_cast %38 : vector<1x1x8x128xbf16> to vector<1x8x128xbf16>
    "tpu.trace_start"() <{level = 10 : i32, message = "bpd,bdn->bpn"}> : () -> ()
    %cst_30 = arith.constant dense<0.000000e+00> : vector<1x8x128xf32>
    %40 = tpu.matmul %37, %39, %cst_30 {dimension_numbers = #tpu.dot_dimension_numbers<[2], [1], [1], [2], [0, 0, 0, 1, 1, 2], [0], [0]>} : vector<1x8x8xbf16>, vector<1x8x128xbf16>, vector<1x8x128xf32> -> vector<1x8x128xf32>
    "tpu.trace_stop"() : () -> ()
    %cst_31 = arith.constant 0.353553385 : f32
    %41 = vector.broadcast %cst_31 : f32 to vector<1x8x128xf32>
    %42 = arith.mulf %40, %41 : vector<1x8x128xf32>
    %43 = arith.addf %42, %9 : vector<1x8x128xf32>
    %cst_32 = arith.constant dense<0xFF800000> : vector<1x8xf32>
    %44 = vector.multi_reduction <maximumf>, %43, %cst_32 [2] : vector<1x8x128xf32> to vector<1x8xf32>
    %45 = vector.shape_cast %44 : vector<1x8xf32> to vector<1x8x1xf32>
    %46 = vector.broadcast %45 : vector<1x8x1xf32> to vector<1x8x128xf32>
    %47 = arith.subf %43, %46 : vector<1x8x128xf32>
    %48 = math.exp %47 : vector<1x8x128xf32>
    %cst_33 = arith.constant dense<0.000000e+00> : vector<1x8xf32>
    %49 = vector.multi_reduction <add>, %48, %cst_33 [2] : vector<1x8x128xf32> to vector<1x8xf32>
    %50 = vector.shape_cast %49 : vector<1x8xf32> to vector<1x8x1xf32>
    %51 = tpu.reciprocal %50 {approx = true} : vector<1x8x1xf32> -> vector<1x8x1xf32>
    %52 = vector.broadcast %51 : vector<1x8x1xf32> to vector<1x8x128xf32>
    %53 = arith.mulf %48, %52 : vector<1x8x128xf32>
    %54 = arith.truncf %53 : vector<1x8x128xf32> to vector<1x8x128xbf16>
    %c0_34 = arith.constant 0 : index
    %c1_35 = arith.constant 1 : index
    %c0_36 = arith.constant 0 : index
    %c0_37 = arith.constant 0 : index
    %55 = vector.load %arg4[%c0_34, %c1_35, %c0_36, %c0_37] : memref<1x4x8x128xbf16, #tpu.memory_space<vmem>>, vector<1x1x8x128xbf16>
    %56 = vector.shape_cast %55 : vector<1x1x8x128xbf16> to vector<1x8x128xbf16>
    "tpu.trace_start"() <{level = 10 : i32, message = "bpn,bdn->bpd"}> : () -> ()
    %cst_38 = arith.constant dense<0.000000e+00> : vector<1x8x8xf32>
    %57 = tpu.matmul %54, %56, %cst_38 {dimension_numbers = #tpu.dot_dimension_numbers<[2], [2], [1], [1], [0, 0, 0, 1, 1, 1], [0], [0]>} : vector<1x8x128xbf16>, vector<1x8x128xbf16>, vector<1x8x8xf32> -> vector<1x8x8xf32>
    "tpu.trace_stop"() : () -> ()
    %c8 = arith.constant 8 : index
    %c0_39 = arith.constant 0 : index
    %58 = vector.load %arg9[%c8, %c0_39] : memref<32x32xf32, #tpu.memory_space<vmem>>, vector<8x32xf32>
    "tpu.trace_start"() <{level = 10 : i32, message = "bpd,de->bpe"}> : () -> ()
    %cst_40 = arith.constant dense<0.000000e+00> : vector<1x8x32xf32>
    %59 = tpu.matmul %57, %58, %cst_40 {dimension_numbers = #tpu.dot_dimension_numbers<[2], [0], [0, 1], [1], [0, 0, 0, 1, 1, 1], [], []>} : vector<1x8x8xf32>, vector<8x32xf32>, vector<1x8x32xf32> -> vector<1x8x32xf32>
    "tpu.trace_stop"() : () -> ()
    %60 = arith.addf %35, %59 : vector<1x8x32xf32>
    %61 = vector.extract_strided_slice %7 {offsets = [0, 0, 16], sizes = [1, 8, 8], strides = [1, 1, 1]} : vector<1x8x32xf32> to vector<1x8x8xf32>
    %62 = arith.truncf %61 : vector<1x8x8xf32> to vector<1x8x8xbf16>
    %c0_41 = arith.constant 0 : index
    %c2 = arith.constant 2 : index
    %c0_42 = arith.constant 0 : index
    %c0_43 = arith.constant 0 : index
    %63 = vector.load %arg3[%c0_41, %c2, %c0_42, %c0_43] : memref<1x4x8x128xbf16, #tpu.memory_space<vmem>>, vector<1x1x8x128xbf16>
    %64 = vector.shape_cast %63 : vector<1x1x8x128xbf16> to vector<1x8x128xbf16>
    "tpu.trace_start"() <{level = 10 : i32, message = "bpd,bdn->bpn"}> : () -> ()
    %cst_44 = arith.constant dense<0.000000e+00> : vector<1x8x128xf32>
    %65 = tpu.matmul %62, %64, %cst_44 {dimension_numbers = #tpu.dot_dimension_numbers<[2], [1], [1], [2], [0, 0, 0, 1, 1, 2], [0], [0]>} : vector<1x8x8xbf16>, vector<1x8x128xbf16>, vector<1x8x128xf32> -> vector<1x8x128xf32>
    "tpu.trace_stop"() : () -> ()
    %cst_45 = arith.constant 0.353553385 : f32
    %66 = vector.broadcast %cst_45 : f32 to vector<1x8x128xf32>
    %67 = arith.mulf %65, %66 : vector<1x8x128xf32>
    %68 = arith.addf %67, %9 : vector<1x8x128xf32>
    %cst_46 = arith.constant dense<0xFF800000> : vector<1x8xf32>
    %69 = vector.multi_reduction <maximumf>, %68, %cst_46 [2] : vector<1x8x128xf32> to vector<1x8xf32>
    %70 = vector.shape_cast %69 : vector<1x8xf32> to vector<1x8x1xf32>
    %71 = vector.broadcast %70 : vector<1x8x1xf32> to vector<1x8x128xf32>
    %72 = arith.subf %68, %71 : vector<1x8x128xf32>
    %73 = math.exp %72 : vector<1x8x128xf32>
    %cst_47 = arith.constant dense<0.000000e+00> : vector<1x8xf32>
    %74 = vector.multi_reduction <add>, %73, %cst_47 [2] : vector<1x8x128xf32> to vector<1x8xf32>
    %75 = vector.shape_cast %74 : vector<1x8xf32> to vector<1x8x1xf32>
    %76 = tpu.reciprocal %75 {approx = true} : vector<1x8x1xf32> -> vector<1x8x1xf32>
    %77 = vector.broadcast %76 : vector<1x8x1xf32> to vector<1x8x128xf32>
    %78 = arith.mulf %73, %77 : vector<1x8x128xf32>
    %79 = arith.truncf %78 : vector<1x8x128xf32> to vector<1x8x128xbf16>
    %c0_48 = arith.constant 0 : index
    %c2_49 = arith.constant 2 : index
    %c0_50 = arith.constant 0 : index
    %c0_51 = arith.constant 0 : index
    %80 = vector.load %arg4[%c0_48, %c2_49, %c0_50, %c0_51] : memref<1x4x8x128xbf16, #tpu.memory_space<vmem>>, vector<1x1x8x128xbf16>
    %81 = vector.shape_cast %80 : vector<1x1x8x128xbf16> to vector<1x8x128xbf16>
    "tpu.trace_start"() <{level = 10 : i32, message = "bpn,bdn->bpd"}> : () -> ()
    %cst_52 = arith.constant dense<0.000000e+00> : vector<1x8x8xf32>
    %82 = tpu.matmul %79, %81, %cst_52 {dimension_numbers = #tpu.dot_dimension_numbers<[2], [2], [1], [1], [0, 0, 0, 1, 1, 1], [0], [0]>} : vector<1x8x128xbf16>, vector<1x8x128xbf16>, vector<1x8x8xf32> -> vector<1x8x8xf32>
    "tpu.trace_stop"() : () -> ()
    %c16 = arith.constant 16 : index
    %c0_53 = arith.constant 0 : index
    %83 = vector.load %arg9[%c16, %c0_53] : memref<32x32xf32, #tpu.memory_space<vmem>>, vector<8x32xf32>
    "tpu.trace_start"() <{level = 10 : i32, message = "bpd,de->bpe"}> : () -> ()
    %cst_54 = arith.constant dense<0.000000e+00> : vector<1x8x32xf32>
    %84 = tpu.matmul %82, %83, %cst_54 {dimension_numbers = #tpu.dot_dimension_numbers<[2], [0], [0, 1], [1], [0, 0, 0, 1, 1, 1], [], []>} : vector<1x8x8xf32>, vector<8x32xf32>, vector<1x8x32xf32> -> vector<1x8x32xf32>
    "tpu.trace_stop"() : () -> ()
    %85 = arith.addf %60, %84 : vector<1x8x32xf32>
    %86 = vector.extract_strided_slice %7 {offsets = [0, 0, 24], sizes = [1, 8, 8], strides = [1, 1, 1]} : vector<1x8x32xf32> to vector<1x8x8xf32>
    %87 = arith.truncf %86 : vector<1x8x8xf32> to vector<1x8x8xbf16>
    %c0_55 = arith.constant 0 : index
    %c3 = arith.constant 3 : index
    %c0_56 = arith.constant 0 : index
    %c0_57 = arith.constant 0 : index
    %88 = vector.load %arg3[%c0_55, %c3, %c0_56, %c0_57] : memref<1x4x8x128xbf16, #tpu.memory_space<vmem>>, vector<1x1x8x128xbf16>
    %89 = vector.shape_cast %88 : vector<1x1x8x128xbf16> to vector<1x8x128xbf16>
    "tpu.trace_start"() <{level = 10 : i32, message = "bpd,bdn->bpn"}> : () -> ()
    %cst_58 = arith.constant dense<0.000000e+00> : vector<1x8x128xf32>
    %90 = tpu.matmul %87, %89, %cst_58 {dimension_numbers = #tpu.dot_dimension_numbers<[2], [1], [1], [2], [0, 0, 0, 1, 1, 2], [0], [0]>} : vector<1x8x8xbf16>, vector<1x8x128xbf16>, vector<1x8x128xf32> -> vector<1x8x128xf32>
    "tpu.trace_stop"() : () -> ()
    %cst_59 = arith.constant 0.353553385 : f32
    %91 = vector.broadcast %cst_59 : f32 to vector<1x8x128xf32>
    %92 = arith.mulf %90, %91 : vector<1x8x128xf32>
    %93 = arith.addf %92, %9 : vector<1x8x128xf32>
    %cst_60 = arith.constant dense<0xFF800000> : vector<1x8xf32>
    %94 = vector.multi_reduction <maximumf>, %93, %cst_60 [2] : vector<1x8x128xf32> to vector<1x8xf32>
    %95 = vector.shape_cast %94 : vector<1x8xf32> to vector<1x8x1xf32>
    %96 = vector.broadcast %95 : vector<1x8x1xf32> to vector<1x8x128xf32>
    %97 = arith.subf %93, %96 : vector<1x8x128xf32>
    %98 = math.exp %97 : vector<1x8x128xf32>
    %cst_61 = arith.constant dense<0.000000e+00> : vector<1x8xf32>
    %99 = vector.multi_reduction <add>, %98, %cst_61 [2] : vector<1x8x128xf32> to vector<1x8xf32>
    %100 = vector.shape_cast %99 : vector<1x8xf32> to vector<1x8x1xf32>
    %101 = tpu.reciprocal %100 {approx = true} : vector<1x8x1xf32> -> vector<1x8x1xf32>
    %102 = vector.broadcast %101 : vector<1x8x1xf32> to vector<1x8x128xf32>
    %103 = arith.mulf %98, %102 : vector<1x8x128xf32>
    %104 = arith.truncf %103 : vector<1x8x128xf32> to vector<1x8x128xbf16>
    %c0_62 = arith.constant 0 : index
    %c3_63 = arith.constant 3 : index
    %c0_64 = arith.constant 0 : index
    %c0_65 = arith.constant 0 : index
    %105 = vector.load %arg4[%c0_62, %c3_63, %c0_64, %c0_65] : memref<1x4x8x128xbf16, #tpu.memory_space<vmem>>, vector<1x1x8x128xbf16>
    %106 = vector.shape_cast %105 : vector<1x1x8x128xbf16> to vector<1x8x128xbf16>
    "tpu.trace_start"() <{level = 10 : i32, message = "bpn,bdn->bpd"}> : () -> ()
    %cst_66 = arith.constant dense<0.000000e+00> : vector<1x8x8xf32>
    %107 = tpu.matmul %104, %106, %cst_66 {dimension_numbers = #tpu.dot_dimension_numbers<[2], [2], [1], [1], [0, 0, 0, 1, 1, 1], [0], [0]>} : vector<1x8x128xbf16>, vector<1x8x128xbf16>, vector<1x8x8xf32> -> vector<1x8x8xf32>
    "tpu.trace_stop"() : () -> ()
    %c24 = arith.constant 24 : index
    %c0_67 = arith.constant 0 : index
    %108 = vector.load %arg9[%c24, %c0_67] : memref<32x32xf32, #tpu.memory_space<vmem>>, vector<8x32xf32>
    "tpu.trace_start"() <{level = 10 : i32, message = "bpd,de->bpe"}> : () -> ()
    %cst_68 = arith.constant dense<0.000000e+00> : vector<1x8x32xf32>
    %109 = tpu.matmul %107, %108, %cst_68 {dimension_numbers = #tpu.dot_dimension_numbers<[2], [0], [0, 1], [1], [0, 0, 0, 1, 1, 1], [], []>} : vector<1x8x8xf32>, vector<8x32xf32>, vector<1x8x32xf32> -> vector<1x8x32xf32>
    "tpu.trace_stop"() : () -> ()
    %110 = arith.addf %85, %109 : vector<1x8x32xf32>
    %c0_69 = arith.constant 0 : index
    %c0_70 = arith.constant 0 : index
    %111 = vector.load %arg10[%c0_69, %c0_70] : memref<1x32xf32, #tpu.memory_space<vmem>>, vector<1x32xf32>
    %112 = vector.shape_cast %111 : vector<1x32xf32> to vector<1x1x32xf32>
    %113 = vector.broadcast %112 : vector<1x1x32xf32> to vector<1x8x32xf32>
    %114 = arith.addf %110, %113 : vector<1x8x32xf32>
    %115 = arith.truncf %114 : vector<1x8x32xf32> to vector<1x8x32xbf16>
    %c0_71 = arith.constant 0 : index
    %c0_72 = arith.constant 0 : index
    %c0_73 = arith.constant 0 : index
    %116 = vector.load %arg5[%c0_71, %c0_72, %c0_73] : memref<1x32x128xbf16, #tpu.memory_space<vmem>>, vector<1x32x128xbf16>
    "tpu.trace_start"() <{level = 10 : i32, message = "bpe,ben->bpn"}> : () -> ()
    %cst_74 = arith.constant dense<0.000000e+00> : vector<1x8x128xf32>
    %117 = tpu.matmul %115, %116, %cst_74 {dimension_numbers = #tpu.dot_dimension_numbers<[2], [1], [1], [2], [0, 0, 0, 1, 1, 2], [0], [0]>} : vector<1x8x32xbf16>, vector<1x32x128xbf16>, vector<1x8x128xf32> -> vector<1x8x128xf32>
    "tpu.trace_stop"() : () -> ()
    %cst_75 = arith.constant 0.176776692 : f32
    %118 = vector.broadcast %cst_75 : f32 to vector<1x8x128xf32>
    %119 = arith.mulf %117, %118 : vector<1x8x128xf32>
    %c0_76 = arith.constant 0 : index
    %c0_77 = arith.constant 0 : index
    %c0_78 = arith.constant 0 : index
    %120 = vector.load %arg7[%c0_76, %c0_77, %c0_78] : memref<1x8x128xf32, #tpu.memory_space<vmem>>, vector<1x8x128xf32>
    %121 = arith.addf %119, %120 : vector<1x8x128xf32>
    %122 = math.tanh %121 : vector<1x8x128xf32>
    %cst_79 = arith.constant 1.000000e+01 : f32
    %123 = vector.broadcast %cst_79 : f32 to vector<1x8x128xf32>
    %124 = arith.mulf %123, %122 : vector<1x8x128xf32>
    %125 = arith.addf %124, %9 : vector<1x8x128xf32>
    %126 = math.exp %125 : vector<1x8x128xf32>
    %cst_80 = arith.constant dense<0.000000e+00> : vector<1x8xf32>
    %127 = vector.multi_reduction <add>, %126, %cst_80 [2] : vector<1x8x128xf32> to vector<1x8xf32>
    %128 = vector.shape_cast %127 : vector<1x8xf32> to vector<1x8x1xf32>
    %129 = tpu.reciprocal %128 {approx = true} : vector<1x8x1xf32> -> vector<1x8x1xf32>
    %130 = vector.broadcast %129 : vector<1x8x1xf32> to vector<1x8x128xf32>
    %131 = arith.mulf %126, %130 : vector<1x8x128xf32>
    %c0_81 = arith.constant 0 : index
    %c0_82 = arith.constant 0 : index
    %c0_83 = arith.constant 0 : index
    %132 = vector.load %arg11[%c0_81, %c0_82, %c0_83] : memref<1x8x128xf32, #tpu.memory_space<vmem>>, vector<1x8x128xf32>
    tpu.vector_store %arg11[%c0_81, %c0_82, %c0_83], %131 {strides = array<i32>} : memref<1x8x128xf32, #tpu.memory_space<vmem>>, vector<1x8x128xf32>,
    return
  }
  func.func @transform_0(%arg0: i32) -> (i32, i32, i32) {
    %c0_i32 = arith.constant 0 : i32
    %c0_i32_0 = arith.constant 0 : i32
    %c0_i32_1 = arith.constant 0 : i32
    return %arg0, %c0_i32, %c0_i32_0 : i32, i32, i32
  }
  func.func @transform_1(%arg0: i32) -> (i32, i32, i32) {
    %c0_i32 = arith.constant 0 : i32
    %c0_i32_0 = arith.constant 0 : i32
    %c0_i32_1 = arith.constant 0 : i32
    return %arg0, %c0_i32, %c0_i32_0 : i32, i32, i32
  }
  func.func @transform_2(%arg0: i32) -> (i32, i32, i32, i32) {
    %c0_i32 = arith.constant 0 : i32
    %c0_i32_0 = arith.constant 0 : i32
    %c0_i32_1 = arith.constant 0 : i32
    %c0_i32_2 = arith.constant 0 : i32
    return %arg0, %c0_i32, %c0_i32_0, %c0_i32_1 : i32, i32, i32, i32
  }
  func.func @transform_3(%arg0: i32) -> (i32, i32, i32, i32) {
    %c0_i32 = arith.constant 0 : i32
    %c0_i32_0 = arith.constant 0 : i32
    %c0_i32_1 = arith.constant 0 : i32
    %c0_i32_2 = arith.constant 0 : i32
    return %arg0, %c0_i32, %c0_i32_0, %c0_i32_1 : i32, i32, i32, i32
  }
  func.func @transform_4(%arg0: i32) -> (i32, i32, i32) {
    %c0_i32 = arith.constant 0 : i32
    %c0_i32_0 = arith.constant 0 : i32
    %c0_i32_1 = arith.constant 0 : i32
    return %arg0, %c0_i32, %c0_i32_0 : i32, i32, i32
  }
  func.func @transform_5(%arg0: i32) -> (i32, i32, i32) {
    %c0_i32 = arith.constant 0 : i32
    %c0_i32_0 = arith.constant 0 : i32
    %c0_i32_1 = arith.constant 0 : i32
    return %arg0, %c0_i32, %c0_i32_0 : i32, i32, i32
  }
  func.func @transform_6(%arg0: i32) -> (i32, i32, i32) {
    %c0_i32 = arith.constant 0 : i32
    %c0_i32_0 = arith.constant 0 : i32
    %c0_i32_1 = arith.constant 0 : i32
    return %arg0, %c0_i32, %c0_i32_0 : i32, i32, i32
  }
  func.func @transform_7(%arg0: i32) -> (i32, i32) {
    %c0_i32 = arith.constant 0 : i32
    %c0_i32_0 = arith.constant 0 : i32
    %c0_i32_1 = arith.constant 0 : i32
    return %c0_i32, %c0_i32_0 : i32, i32
  }
  func.func @transform_8(%arg0: i32) -> (i32, i32) {
    %c0_i32 = arith.constant 0 : i32
    %c0_i32_0 = arith.constant 0 : i32
    %c0_i32_1 = arith.constant 0 : i32
    return %c0_i32, %c0_i32_0 : i32, i32
  }
  func.func @transform_9(%arg0: i32) -> (i32, i32) {
    %c0_i32 = arith.constant 0 : i32
    %c0_i32_0 = arith.constant 0 : i32
    %c0_i32_1 = arith.constant 0 : i32
    return %c0_i32, %c0_i32_0 : i32, i32
  }
  func.func @transform_10(%arg0: i32) -> (i32, i32, i32) {
    %c0_i32 = arith.constant 0 : i32
    %c0_i32_0 = arith.constant 0 : i32
    %c0_i32_1 = arith.constant 0 : i32
    return %arg0, %c0_i32, %c0_i32_0 : i32, i32, i32
  }
}

</mosaic_0001>

<llo_original>
// kernel: tpu_custom_call.1
$region0: #{tpu_custom_call.1}
  #allocation0 [shape = 'u32[]', space=smem, size = 0x4, offset = 0x4, fixed_abs, tag = 'smem constant byte address 0x4 - core index']
  #allocation1 [shape = 'u32[144,128]{1,0:T(1,128)}', space=vmem, size = 0x12000, scoped, tag = 'internal scratch']
  %s0 = inlined_call_operand.hbm [shape: f32[2,8,32], index: 0, kind: input, shape index: {}]
  %s1 = inlined_call_operand.hbm [shape: f32[2,8,32], index: 1, kind: input, shape index: {}]
  %s2 = inlined_call_operand.hbm [shape: bf16[2,4,8,128], index: 2, kind: input, shape index: {}]
  %s3 = inlined_call_operand.hbm [shape: bf16[2,4,8,128], index: 3, kind: input, shape index: {}]
  %s4 = inlined_call_operand.hbm [shape: bf16[2,32,128], index: 4, kind: input, shape index: {}]
  %s5 = inlined_call_operand.hbm [shape: bf16[2,8,128], index: 5, kind: input, shape index: {}]
  %s6 = inlined_call_operand.vmem [shape: f32[2,8,128], index: 6, kind: input, shape index: {}]
  %s7 = inlined_call_operand.hbm [shape: f32[32,32], index: 7, kind: input, shape index: {}]
  %s8 = inlined_call_operand.hbm [shape: f32[32,32], index: 8, kind: input, shape index: {}]
  %s9 = inlined_call_operand.vmem [shape: f32[1,32], index: 9, kind: input, shape index: {}]
  %s10 = inlined_call_operand.hbm [shape: f32[2,8,128], index: 10, kind: output, shape index: {}]
  %s11 = sld [smem:[#allocation0]]
  $region105: #{tpu_custom_call.1} parent=0
    _
  %s13 = ssub.s32 1, %s11
  %s14 = scalar_select 0, %s13, %s11
  $region1: #{tpu_custom_call.1} parent=0
    #allocation2 [shape = 'u8[8192]{0}', space=vmem, size = 0x2000, scoped, tag = 'input window, operand 0']
    #allocation3 [shape = 's32[2]{0}', space=sflag, size = 0x8, scoped, tag = 'scoped memory for tpu_custom_call.1']
    #allocation4 [shape = 's32[2]{0}', space=sflag, size = 0x8, scoped, tag = 'scoped memory for tpu_custom_call.1']
    #allocation5 [shape = 'u8[8192]{0}', space=vmem, size = 0x2000, scoped, tag = 'input window, operand 1']
    #allocation6 [shape = 's32[2]{0}', space=sflag, size = 0x8, scoped, tag = 'scoped memory for tpu_custom_call.1']
    #allocation7 [shape = 'u8[16384]{0}', space=vmem, size = 0x4000, scoped, tag = 'input window, operand 2']
    #allocation8 [shape = 'u8[16384]{0}', space=vmem, size = 0x4000, scoped, tag = 'input window, operand 3']
    #allocation9 [shape = 's32[2]{0}', space=sflag, size = 0x8, scoped, tag = 'scoped memory for tpu_custom_call.1']
    #allocation10 [shape = 'u8[16384]{0}', space=vmem, size = 0x4000, scoped, tag = 'input window, operand 4']
    #allocation11 [shape = 'u8[4096]{0}', space=vmem, size = 0x1000, scoped, tag = 'input window, operand 5']
    #allocation12 [shape = 's32[2]{0}', space=sflag, size = 0x8, scoped, tag = 'scoped memory for tpu_custom_call.1']
    #allocation13 [shape = 'u8[16384]{0}', space=vmem, size = 0x4000, scoped, tag = 'input window, operand 7, single buffered']
    #allocation14 [shape = 'u8[16384]{0}', space=vmem, size = 0x4000, scoped, tag = 'input window, operand 8, single buffered']
    #allocation15 [shape = 's32[1]{0}', space=sflag, size = 0x4, scoped, tag = 'scoped memory for tpu_custom_call.1']
    #allocation16 [shape = 'u8[8192]{0}', space=vmem, size = 0x2000, scoped, tag = 'output window, operand 0']
    %15 = vsyncpa [#allocation3], 0
    %s16 = scalar_lea.sflag [#allocation3], 1
    %17 = vsyncpa %s16, 0
    %18 = vsyncpa [#allocation6], 0
    %s19 = scalar_lea.sflag [#allocation6], 1
    %20 = vsyncpa %s19, 0
    %21 = vsyncpa [#allocation9], 0
    %s22 = scalar_lea.sflag [#allocation9], 1
    %23 = vsyncpa %s22, 0
    %24 = vsyncpa [#allocation12], 0
    %s25 = scalar_lea.sflag [#allocation12], 1
    %26 = vsyncpa %s25, 0
    %27 = vsyncpa [#allocation15], 0
    %28 = vsyncpa [#allocation4], 0
    %s29 = scalar_lea.sflag [#allocation4], 1
    %30 = vsyncpa %s29, 0
    loop: start=0, step=1, limit=4
    $region2: #{tpu_custom_call.1} parent=1 // loop_pre_header
      _
    $region3: #{tpu_custom_call.1} parent=1 // loop_header
      %s32 = sphi 0, %s36
      %p33 = scmp.ge.s32.totalorder %s32, 4
      %s42 = sphi 0, %s44
      %s45 = sphi 0, %s42
      %s46 = sphi 0, %s45
      %s62 = sphi 0, %s46
      %s68 = sphi 0, %s70
      %s71 = sphi 0, %s68
      %s72 = sphi 0, %s71
      %s88 = sphi 0, %s72
      %s94 = sphi 0, %s96
      %s97 = sphi 0, %s94
      %s98 = sphi 0, %s97
      %s114 = sphi 0, %s98
      %s120 = sphi 0, %s122
      %s123 = sphi 0, %s120
      %s124 = sphi 0, %s123
      %s140 = sphi 0, %s124
      %s146 = sphi 0, %s148
      %s149 = sphi 0, %s146
      %s150 = sphi 0, %s149
      %s166 = sphi 0, %s150
      %s172 = sphi 0, %s174
      %s175 = sphi 0, %s172
      %s176 = sphi 0, %s175
      %s192 = sphi 0, %s176
      %s198 = sphi 0, %s200
      %s201 = sphi 0, %s198
      %s202 = sphi 0, %s201
      %s218 = sphi 0, %s202
      %s222 = sphi 0, %s222
      %s224 = sphi 0, %s222
      %s225 = sphi 0, %s224
      %s239 = sphi 0, %s225
      %s243 = sphi 0, %s243
      %s245 = sphi 0, %s243
      %s246 = sphi 0, %s245
      %s260 = sphi 0, %s246
      %s264 = sphi 0, %s264
      %s266 = sphi 0, %s264
      %s267 = sphi 0, %s266
      %s281 = sphi 0, %s267
      %s287 = sphi 0, %s289
      %s290 = sphi 0, %s287
      %s291 = sphi 0, %s290
      %s307 = sphi 0, %s291
    $region4: #{tpu_custom_call.1} parent=1 // loop_header_branch
      %35 = sbr.rel (%p33) target = $region8
    $region5: #{tpu_custom_call.1} parent=1 // loop_body
      %s37 = ssub.s32 %s32, 1
      %s38 = ssub.s32 %s32, 2
      %s39 = sadd.s32 %s32, 1
      %s40 = ssub.s32 %s32, %s39
      %p41 = scmp.eq.s32.totalorder %s40, 0
      %s43 = sadd.s32 %s42, 1
      %s44 = scalar_select %p41, %s42, %s43
      %p47 = pneg %p41
      %p48 = scmp.eq.s32.totalorder %s32, 1
      %p49 = por %p47, %p48
      %p50 = scmp.ne.s32.totalorder %s42, %s45
      %p51 = scmp.eq.s32.totalorder %s32, 0
      %p52 = por %p50, %p51
      %p53 = scmp.ne.s32.totalorder %s42, %s45
      %p54 = scmp.eq.s32.totalorder %s37, 1
      %p55 = por %p53, %p54
      %p56 = scmp.ne.s32.totalorder %s45, %s46
      %p57 = scmp.eq.s32.totalorder %s37, 0
      %p58 = por %p56, %p57
      %p59 = scmp.ne.s32.totalorder %s45, %s46
      %p60 = scmp.eq.s32.totalorder %s38, 1
      %p61 = por %p59, %p60
      %p63 = scmp.ne.s32.totalorder %s46, %s62
      %p64 = scmp.eq.s32.totalorder %s38, 0
      %p65 = por %p63, %p64
      %s66 = ssub.s32 %s32, %s39
      %p67 = scmp.eq.s32.totalorder %s66, 0
      %s69 = sadd.s32 %s68, 1
      %s70 = scalar_select %p67, %s68, %s69
      %p73 = pneg %p67
      %p74 = scmp.eq.s32.totalorder %s32, 1
      %p75 = por %p73, %p74
      %p76 = scmp.ne.s32.totalorder %s68, %s71
      %p77 = scmp.eq.s32.totalorder %s32, 0
      %p78 = por %p76, %p77
      %p79 = scmp.ne.s32.totalorder %s68, %s71
      %p80 = scmp.eq.s32.totalorder %s37, 1
      %p81 = por %p79, %p80
      %p82 = scmp.ne.s32.totalorder %s71, %s72
      %p83 = scmp.eq.s32.totalorder %s37, 0
      %p84 = por %p82, %p83
      %p85 = scmp.ne.s32.totalorder %s71, %s72
      %p86 = scmp.eq.s32.totalorder %s38, 1
      %p87 = por %p85, %p86
      %p89 = scmp.ne.s32.totalorder %s72, %s88
      %p90 = scmp.eq.s32.totalorder %s38, 0
      %p91 = por %p89, %p90
      %s92 = ssub.s32 %s32, %s39
      %p93 = scmp.eq.s32.totalorder %s92, 0
      %s95 = sadd.s32 %s94, 1
      %s96 = scalar_select %p93, %s94, %s95
      %p99 = pneg %p93
      %p100 = scmp.eq.s32.totalorder %s32, 1
      %p101 = por %p99, %p100
      %p102 = scmp.ne.s32.totalorder %s94, %s97
      %p103 = scmp.eq.s32.totalorder %s32, 0
      %p104 = por %p102, %p103
      %p105 = scmp.ne.s32.totalorder %s94, %s97
      %p106 = scmp.eq.s32.totalorder %s37, 1
      %p107 = por %p105, %p106
      %p108 = scmp.ne.s32.totalorder %s97, %s98
      %p109 = scmp.eq.s32.totalorder %s37, 0
      %p110 = por %p108, %p109
      %p111 = scmp.ne.s32.totalorder %s97, %s98
      %p112 = scmp.eq.s32.totalorder %s38, 1
      %p113 = por %p111, %p112
      %p115 = scmp.ne.s32.totalorder %s98, %s114
      %p116 = scmp.eq.s32.totalorder %s38, 0
      %p117 = por %p115, %p116
      %s118 = ssub.s32 %s32, %s39
      %p119 = scmp.eq.s32.totalorder %s118, 0
      %s121 = sadd.s32 %s120, 1
      %s122 = scalar_select %p119, %s120, %s121
      %p125 = pneg %p119
      %p126 = scmp.eq.s32.totalorder %s32, 1
      %p127 = por %p125, %p126
      %p128 = scmp.ne.s32.totalorder %s120, %s123
      %p129 = scmp.eq.s32.totalorder %s32, 0
      %p130 = por %p128, %p129
      %p131 = scmp.ne.s32.totalorder %s120, %s123
      %p132 = scmp.eq.s32.totalorder %s37, 1
      %p133 = por %p131, %p132
      %p134 = scmp.ne.s32.totalorder %s123, %s124
      %p135 = scmp.eq.s32.totalorder %s37, 0
      %p136 = por %p134, %p135
      %p137 = scmp.ne.s32.totalorder %s123, %s124
      %p138 = scmp.eq.s32.totalorder %s38, 1
      %p139 = por %p137, %p138
      %p141 = scmp.ne.s32.totalorder %s124, %s140
      %p142 = scmp.eq.s32.totalorder %s38, 0
      %p143 = por %p141, %p142
      %s144 = ssub.s32 %s32, %s39
      %p145 = scmp.eq.s32.totalorder %s144, 0
      %s147 = sadd.s32 %s146, 1
      %s148 = scalar_select %p145, %s146, %s147
      %p151 = pneg %p145
      %p152 = scmp.eq.s32.totalorder %s32, 1
      %p153 = por %p151, %p152
      %p154 = scmp.ne.s32.totalorder %s146, %s149
      %p155 = scmp.eq.s32.totalorder %s32, 0
      %p156 = por %p154, %p155
      %p157 = scmp.ne.s32.totalorder %s146, %s149
      %p158 = scmp.eq.s32.totalorder %s37, 1
      %p159 = por %p157, %p158
      %p160 = scmp.ne.s32.totalorder %s149, %s150
      %p161 = scmp.eq.s32.totalorder %s37, 0
      %p162 = por %p160, %p161
      %p163 = scmp.ne.s32.totalorder %s149, %s150
      %p164 = scmp.eq.s32.totalorder %s38, 1
      %p165 = por %p163, %p164
      %p167 = scmp.ne.s32.totalorder %s150, %s166
      %p168 = scmp.eq.s32.totalorder %s38, 0
      %p169 = por %p167, %p168
      %s170 = ssub.s32 %s32, %s39
      %p171 = scmp.eq.s32.totalorder %s170, 0
      %s173 = sadd.s32 %s172, 1
      %s174 = scalar_select %p171, %s172, %s173
      %p177 = pneg %p171
      %p178 = scmp.eq.s32.totalorder %s32, 1
      %p179 = por %p177, %p178
      %p180 = scmp.ne.s32.totalorder %s172, %s175
      %p181 = scmp.eq.s32.totalorder %s32, 0
      %p182 = por %p180, %p181
      %p183 = scmp.ne.s32.totalorder %s172, %s175
      %p184 = scmp.eq.s32.totalorder %s37, 1
      %p185 = por %p183, %p184
      %p186 = scmp.ne.s32.totalorder %s175, %s176
      %p187 = scmp.eq.s32.totalorder %s37, 0
      %p188 = por %p186, %p187
      %p189 = scmp.ne.s32.totalorder %s175, %s176
      %p190 = scmp.eq.s32.totalorder %s38, 1
      %p191 = por %p189, %p190
      %p193 = scmp.ne.s32.totalorder %s176, %s192
      %p194 = scmp.eq.s32.totalorder %s38, 0
      %p195 = por %p193, %p194
      %s196 = ssub.s32 %s32, %s39
      %p197 = scmp.eq.s32.totalorder %s196, 0
      %s199 = sadd.s32 %s198, 1
      %s200 = scalar_select %p197, %s198, %s199
      %p203 = pneg %p197
      %p204 = scmp.eq.s32.totalorder %s32, 1
      %p205 = por %p203, %p204
      %p206 = scmp.ne.s32.totalorder %s198, %s201
      %p207 = scmp.eq.s32.totalorder %s32, 0
      %p208 = por %p206, %p207
      %p209 = scmp.ne.s32.totalorder %s198, %s201
      %p210 = scmp.eq.s32.totalorder %s37, 1
      %p211 = por %p209, %p210
      %p212 = scmp.ne.s32.totalorder %s201, %s202
      %p213 = scmp.eq.s32.totalorder %s37, 0
      %p214 = por %p212, %p213
      %p215 = scmp.ne.s32.totalorder %s201, %s202
      %p216 = scmp.eq.s32.totalorder %s38, 1
      %p217 = por %p215, %p216
      %p219 = scmp.ne.s32.totalorder %s202, %s218
      %p220 = scmp.eq.s32.totalorder %s38, 0
      %p221 = por %p219, %p220
      %s223 = sadd.s32 %s222, 1
      %p226 = scmp.eq.s32.totalorder %s32, 1
      %p227 = scmp.ne.s32.totalorder %s222, %s224
      %p228 = scmp.eq.s32.totalorder %s32, 0
      %p229 = por %p227, %p228
      %p230 = scmp.ne.s32.totalorder %s222, %s224
      %p231 = scmp.eq.s32.totalorder %s37, 1
      %p232 = por %p230, %p231
      %p233 = scmp.ne.s32.totalorder %s224, %s225
      %p234 = scmp.eq.s32.totalorder %s37, 0
      %p235 = por %p233, %p234
      %p236 = scmp.ne.s32.totalorder %s224, %s225
      %p237 = scmp.eq.s32.totalorder %s38, 1
      %p238 = por %p236, %p237
      %p240 = scmp.ne.s32.totalorder %s225, %s239
      %p241 = scmp.eq.s32.totalorder %s38, 0
      %p242 = por %p240, %p241
      %s244 = sadd.s32 %s243, 1
      %p247 = scmp.eq.s32.totalorder %s32, 1
      %p248 = scmp.ne.s32.totalorder %s243, %s245
      %p249 = scmp.eq.s32.totalorder %s32, 0
      %p250 = por %p248, %p249
      %p251 = scmp.ne.s32.totalorder %s243, %s245
      %p252 = scmp.eq.s32.totalorder %s37, 1
      %p253 = por %p251, %p252
      %p254 = scmp.ne.s32.totalorder %s245, %s246
      %p255 = scmp.eq.s32.totalorder %s37, 0
      %p256 = por %p254, %p255
      %p257 = scmp.ne.s32.totalorder %s245, %s246
      %p258 = scmp.eq.s32.totalorder %s38, 1
      %p259 = por %p257, %p258
      %p261 = scmp.ne.s32.totalorder %s246, %s260
      %p262 = scmp.eq.s32.totalorder %s38, 0
      %p263 = por %p261, %p262
      %s265 = sadd.s32 %s264, 1
      %p268 = scmp.eq.s32.totalorder %s32, 1
      %p269 = scmp.ne.s32.totalorder %s264, %s266
      %p270 = scmp.eq.s32.totalorder %s32, 0
      %p271 = por %p269, %p270
      %p272 = scmp.ne.s32.totalorder %s264, %s266
      %p273 = scmp.eq.s32.totalorder %s37, 1
      %p274 = por %p272, %p273
      %p275 = scmp.ne.s32.totalorder %s266, %s267
      %p276 = scmp.eq.s32.totalorder %s37, 0
      %p277 = por %p275, %p276
      %p278 = scmp.ne.s32.totalorder %s266, %s267
      %p279 = scmp.eq.s32.totalorder %s38, 1
      %p280 = por %p278, %p279
      %p282 = scmp.ne.s32.totalorder %s267, %s281
      %p283 = scmp.eq.s32.totalorder %s38, 0
      %p284 = por %p282, %p283
      %s285 = ssub.s32 %s32, %s39
      %p286 = scmp.eq.s32.totalorder %s285, 0
      %s288 = sadd.s32 %s287, 1
      %s289 = scalar_select %p286, %s287, %s288
      %p292 = pneg %p286
      %p293 = scmp.eq.s32.totalorder %s32, 1
      %p294 = por %p292, %p293
      %p295 = scmp.ne.s32.totalorder %s287, %s290
      %p296 = scmp.eq.s32.totalorder %s32, 0
      %p297 = por %p295, %p296
      %p298 = scmp.ne.s32.totalorder %s287, %s290
      %p299 = scmp.eq.s32.totalorder %s37, 1
      %p300 = por %p298, %p299
      %p301 = scmp.ne.s32.totalorder %s290, %s291
      %p302 = scmp.eq.s32.totalorder %s37, 0
      %p303 = por %p301, %p302
      %p304 = scmp.ne.s32.totalorder %s290, %s291
      %p305 = scmp.eq.s32.totalorder %s38, 1
      %p306 = por %p304, %p305
      %p308 = scmp.ne.s32.totalorder %s291, %s307
      %p309 = scmp.eq.s32.totalorder %s38, 0
      %p310 = por %p308, %p309
      %p311 = scmp.le.s32.totalorder 1, %s32
      %p312 = scmp.lt.s32.totalorder %s32, 3
      %p313 = pnand %p311, %p312
      %p314 = pneg %p313
      // Predicated region
      $region9: #{tpu_custom_call.1} parent=5 // pred_check
        _
      $region10: #{tpu_custom_call.1} parent=5 // pred_check_branch
        %316 = sbr.rel (%p313) target = $region12
      $region11: #{tpu_custom_call.1} parent=5 // pred_region
        %s317 = ssub.s32 %s32, 1
        // Predicated region
        $region13: #{tpu_custom_call.1} parent=11 // pred_check
          %p318 = pneg %p235
        $region14: #{tpu_custom_call.1} parent=11 // pred_check_branch
          %320 = sbr.rel (%p318) target = $region16
        $region15: #{tpu_custom_call.1} parent=11 // pred_region
          %s322 = ssub.s32 512, 512
          %323 = vsyncadd [#allocation12], %s322
          %s324 = sshll.u32 [#allocation13], 4
          %s325 = int_to_ptr.vmem [resolvable:$true] %s324
          %330 = dma.hbm_to_vmem [thread:$0]  %s7, 512, %s325, [#allocation12], 128, 128, 8
        $region16: #{tpu_custom_call.1} parent=11 // pred_fallthru
          _
        // Predicated region
        $region17: #{tpu_custom_call.1} parent=11 // pred_check
          %p331 = pneg %p256
        $region18: #{tpu_custom_call.1} parent=11 // pred_check_branch
          %333 = sbr.rel (%p331) target = $region20
        $region19: #{tpu_custom_call.1} parent=11 // pred_region
          %s335 = ssub.s32 512, 512
          %336 = vsyncadd [#allocation15], %s335
          %s337 = sshll.u32 [#allocation14], 4
          %s338 = int_to_ptr.vmem [resolvable:$true] %s337
          %343 = dma.hbm_to_vmem [thread:$0]  %s8, 512, %s338, [#allocation15], 128, 128, 8
        $region20: #{tpu_custom_call.1} parent=11 // pred_fallthru
          _
        // Predicated region
        $region21: #{tpu_custom_call.1} parent=11 // pred_check
          %p344 = pneg %p277
        $region22: #{tpu_custom_call.1} parent=11 // pred_check_branch
          %346 = sbr.rel (%p344) target = $region24
        $region23: #{tpu_custom_call.1} parent=11 // pred_region
          _
        $region24: #{tpu_custom_call.1} parent=11 // pred_fallthru
          _
      $region12: #{tpu_custom_call.1} parent=5 // pred_fallthru
        _
      %p347 = scmp.lt.s32.totalorder %s32, 2
      // Predicated region
      $region25: #{tpu_custom_call.1} parent=5 // pred_check
        %p348 = pneg %p347
      $region26: #{tpu_custom_call.1} parent=5 // pred_check_branch
        %350 = sbr.rel (%p348) target = $region28
      $region27: #{tpu_custom_call.1} parent=5 // pred_region
        // Predicated region
        $region29: #{tpu_custom_call.1} parent=27 // pred_check
          %p351 = pneg %p52
        $region30: #{tpu_custom_call.1} parent=27 // pred_check_branch
          %353 = sbr.rel (%p351) target = $region32
        $region31: #{tpu_custom_call.1} parent=27 // pred_region
          %s354 = sand.u32 %s42, 1
          %s355 = scalar_lea.sflag [#allocation3], %s354
          %s356 = sand.u32 %s42, 1
          %s357 = smul.addr %s356, 8
          %s358 = scalar_lea.vmem [#allocation2], %s357
          %s360 = ssub.s32 128, 128
          %361 = vsyncadd %s355, %s360
          %s362 = smul.addr %s32, 128
          %s363 = scalar_lea.hbm %s0, %s362
          %s365 = sshll.u32 %s358, 4
          %s366 = int_to_ptr.vmem [resolvable:$true] %s365
          %368 = dma.hbm_to_vmem [thread:$0]  %s363, 128, %s366, %s355
        $region32: #{tpu_custom_call.1} parent=27 // pred_fallthru
          _
        // Predicated region
        $region33: #{tpu_custom_call.1} parent=27 // pred_check
          %p369 = pneg %p78
        $region34: #{tpu_custom_call.1} parent=27 // pred_check_branch
          %371 = sbr.rel (%p369) target = $region36
        $region35: #{tpu_custom_call.1} parent=27 // pred_region
          %s372 = sand.u32 %s32, 1
          %s373 = scalar_lea.sflag [#allocation6], %s372
          %s374 = sand.u32 %s68, 1
          %s375 = smul.addr %s374, 8
          %s376 = scalar_lea.vmem [#allocation5], %s375
          %s378 = ssub.s32 128, 128
          %379 = vsyncadd %s373, %s378
          %s380 = smul.addr %s32, 128
          %s381 = scalar_lea.hbm %s1, %s380
          %s383 = sshll.u32 %s376, 4
          %s384 = int_to_ptr.vmem [resolvable:$true] %s383
          %386 = dma.hbm_to_vmem [thread:$0]  %s381, 128, %s384, %s373
        $region36: #{tpu_custom_call.1} parent=27 // pred_fallthru
          _
        // Predicated region
        $region37: #{tpu_custom_call.1} parent=27 // pred_check
          %p387 = pneg %p104
        $region38: #{tpu_custom_call.1} parent=27 // pred_check_branch
          %389 = sbr.rel (%p387) target = $region40
        $region39: #{tpu_custom_call.1} parent=27 // pred_region
          %s390 = sand.u32 %s32, 1
          %s391 = scalar_lea.sflag [#allocation6], %s390
          %s392 = sand.u32 %s94, 1
          %s393 = smul.addr %s392, 16
          %s394 = scalar_lea.vmem [#allocation7], %s393
          %s396 = ssub.s32 256, 256
          %397 = vsyncadd %s391, %s396
          %s398 = smul.addr %s32, 4
          %s399 = smul.addr %s398, 64
          %s400 = scalar_lea.hbm %s2, %s399
          %s401 = sshll.u32 %s394, 4
          %s402 = int_to_ptr.vmem [resolvable:$true] %s401
          %407 = dma.hbm_to_vmem [thread:$0]  %s400, 256, %s402, %s391, 64, 64, 4
        $region40: #{tpu_custom_call.1} parent=27 // pred_fallthru
          _
        // Predicated region
        $region41: #{tpu_custom_call.1} parent=27 // pred_check
          %p408 = pneg %p130
        $region42: #{tpu_custom_call.1} parent=27 // pred_check_branch
          %410 = sbr.rel (%p408) target = $region44
        $region43: #{tpu_custom_call.1} parent=27 // pred_region
          %s411 = sand.u32 %s32, 1
          %s412 = scalar_lea.sflag [#allocation9], %s411
          %s413 = sand.u32 %s120, 1
          %s414 = smul.addr %s413, 16
          %s415 = scalar_lea.vmem [#allocation8], %s414
          %s417 = ssub.s32 256, 256
          %418 = vsyncadd %s412, %s417
          %s419 = smul.addr %s32, 4
          %s420 = smul.addr %s419, 64
          %s421 = scalar_lea.hbm %s3, %s420
          %s422 = sshll.u32 %s415, 4
          %s423 = int_to_ptr.vmem [resolvable:$true] %s422
          %428 = dma.hbm_to_vmem [thread:$0]  %s421, 256, %s423, %s412, 64, 64, 4
        $region44: #{tpu_custom_call.1} parent=27 // pred_fallthru
          _
        // Predicated region
        $region45: #{tpu_custom_call.1} parent=27 // pred_check
          %p429 = pneg %p156
        $region46: #{tpu_custom_call.1} parent=27 // pred_check_branch
          %431 = sbr.rel (%p429) target = $region48
        $region47: #{tpu_custom_call.1} parent=27 // pred_region
          %s432 = sand.u32 %s32, 1
          %s433 = scalar_lea.sflag [#allocation9], %s432
          %s434 = sand.u32 %s146, 1
          %s435 = smul.addr %s434, 16
          %s436 = scalar_lea.vmem [#allocation10], %s435
          %s438 = ssub.s32 256, 256
          %439 = vsyncadd %s433, %s438
          %s440 = smul.addr %s32, 4
          %s441 = smul.addr %s440, 64
          %s442 = scalar_lea.hbm %s4, %s441
          %s443 = sshll.u32 %s436, 4
          %s444 = int_to_ptr.vmem [resolvable:$true] %s443
          %449 = dma.hbm_to_vmem [thread:$0]  %s442, 256, %s444, %s433, 64, 64, 4
        $region48: #{tpu_custom_call.1} parent=27 // pred_fallthru
          _
        // Predicated region
        $region49: #{tpu_custom_call.1} parent=27 // pred_check
          %p450 = pneg %p182
        $region50: #{tpu_custom_call.1} parent=27 // pred_check_branch
          %452 = sbr.rel (%p450) target = $region52
        $region51: #{tpu_custom_call.1} parent=27 // pred_region
          %s453 = sand.u32 %s32, 1
          %s454 = scalar_lea.sflag [#allocation12], %s453
          %s455 = sand.u32 %s172, 1
          %s456 = smul.addr %s455, 4
          %s457 = scalar_lea.vmem [#allocation11], %s456
          %s459 = ssub.s32 64, 64
          %460 = vsyncadd %s454, %s459
          %s461 = smul.addr %s32, 64
          %s462 = scalar_lea.hbm %s5, %s461
          %s464 = sshll.u32 %s457, 4
          %s465 = int_to_ptr.vmem [resolvable:$true] %s464
          %467 = dma.hbm_to_vmem [thread:$0]  %s462, 64, %s465, %s454
        $region52: #{tpu_custom_call.1} parent=27 // pred_fallthru
          _
        // Predicated region
        $region53: #{tpu_custom_call.1} parent=27 // pred_check
          %p468 = pneg %p208
        $region54: #{tpu_custom_call.1} parent=27 // pred_check_branch
          %470 = sbr.rel (%p468) target = $region56
        $region55: #{tpu_custom_call.1} parent=27 // pred_region
          %p471 = scmp.lt.s32.totalorder %s32, 1
          %s472 = scalar_select %p471, %s32, 1
          %s473 = smul.addr %s472, 8
          %s474 = scalar_lea.vmem %s6, %s473
        $region56: #{tpu_custom_call.1} parent=27 // pred_fallthru
          _
      $region28: #{tpu_custom_call.1} parent=5 // pred_fallthru
        _
      %p475 = scmp.le.s32.totalorder 1, %s32
      %p476 = scmp.lt.s32.totalorder %s32, 3
      %p477 = pnand %p475, %p476
      %p478 = pneg %p477
      // Predicated region
      $region57: #{tpu_custom_call.1} parent=5 // pred_check
        _
      $region58: #{tpu_custom_call.1} parent=5 // pred_check_branch
        %480 = sbr.rel (%p477) target = $region60
      $region59: #{tpu_custom_call.1} parent=5 // pred_region
        %s481 = ssub.s32 %s32, 1
        %s482 = sand.u32 %s45, 1
        %s483 = scalar_lea.sflag [#allocation3], %s482
        %s484 = sand.u32 %s45, 1
        %s485 = smul.addr %s484, 8
        %s486 = scalar_lea.vmem [#allocation2], %s485
        // Predicated region
        $region61: #{tpu_custom_call.1} parent=59 // pred_check
          %p487 = pneg %p58
        $region62: #{tpu_custom_call.1} parent=59 // pred_check_branch
          %489 = sbr.rel (%p487) target = $region64
        $region63: #{tpu_custom_call.1} parent=59 // pred_region
          %490 = dma.done %s483, 128
        $region64: #{tpu_custom_call.1} parent=59 // pred_fallthru
          _
        %s491 = sand.u32 %s37, 1
        %s492 = scalar_lea.sflag [#allocation6], %s491
        %s493 = sand.u32 %s71, 1
        %s494 = smul.addr %s493, 8
        %s495 = scalar_lea.vmem [#allocation5], %s494
        // Predicated region
        $region65: #{tpu_custom_call.1} parent=59 // pred_check
          %p496 = pneg %p84
        $region66: #{tpu_custom_call.1} parent=59 // pred_check_branch
          %498 = sbr.rel (%p496) target = $region68
        $region67: #{tpu_custom_call.1} parent=59 // pred_region
          %499 = dma.done %s492, 128
        $region68: #{tpu_custom_call.1} parent=59 // pred_fallthru
          _
        %s500 = sand.u32 %s37, 1
        %s501 = scalar_lea.sflag [#allocation6], %s500
        %s502 = sand.u32 %s97, 1
        %s503 = smul.addr %s502, 16
        %s504 = scalar_lea.vmem [#allocation7], %s503
        // Predicated region
        $region69: #{tpu_custom_call.1} parent=59 // pred_check
          %p505 = pneg %p110
        $region70: #{tpu_custom_call.1} parent=59 // pred_check_branch
          %507 = sbr.rel (%p505) target = $region72
        $region71: #{tpu_custom_call.1} parent=59 // pred_region
          %508 = dma.done %s501, 256
        $region72: #{tpu_custom_call.1} parent=59 // pred_fallthru
          _
        %s509 = sand.u32 %s37, 1
        %s510 = scalar_lea.sflag [#allocation9], %s509
        %s511 = sand.u32 %s123, 1
        %s512 = smul.addr %s511, 16
        %s513 = scalar_lea.vmem [#allocation8], %s512
        // Predicated region
        $region73: #{tpu_custom_call.1} parent=59 // pred_check
          %p514 = pneg %p136
        $region74: #{tpu_custom_call.1} parent=59 // pred_check_branch
          %516 = sbr.rel (%p514) target = $region76
        $region75: #{tpu_custom_call.1} parent=59 // pred_region
          %517 = dma.done %s510, 256
        $region76: #{tpu_custom_call.1} parent=59 // pred_fallthru
          _
        %s518 = sand.u32 %s37, 1
        %s519 = scalar_lea.sflag [#allocation9], %s518
        %s520 = sand.u32 %s149, 1
        %s521 = smul.addr %s520, 16
        %s522 = scalar_lea.vmem [#allocation10], %s521
        // Predicated region
        $region77: #{tpu_custom_call.1} parent=59 // pred_check
          %p523 = pneg %p162
        $region78: #{tpu_custom_call.1} parent=59 // pred_check_branch
          %525 = sbr.rel (%p523) target = $region80
        $region79: #{tpu_custom_call.1} parent=59 // pred_region
          %526 = dma.done %s519, 256
        $region80: #{tpu_custom_call.1} parent=59 // pred_fallthru
          _
        %s527 = sand.u32 %s37, 1
        %s528 = scalar_lea.sflag [#allocation12], %s527
        %s529 = sand.u32 %s175, 1
        %s530 = smul.addr %s529, 4
        %s531 = scalar_lea.vmem [#allocation11], %s530
        // Predicated region
        $region81: #{tpu_custom_call.1} parent=59 // pred_check
          %p532 = pneg %p188
        $region82: #{tpu_custom_call.1} parent=59 // pred_check_branch
          %534 = sbr.rel (%p532) target = $region84
        $region83: #{tpu_custom_call.1} parent=59 // pred_region
          %535 = dma.done %s528, 64
        $region84: #{tpu_custom_call.1} parent=59 // pred_fallthru
          _
        // Predicated region
        $region85: #{tpu_custom_call.1} parent=59 // pred_check
          %p536 = pneg %p235
        $region86: #{tpu_custom_call.1} parent=59 // pred_check_branch
          %538 = sbr.rel (%p536) target = $region88
        $region87: #{tpu_custom_call.1} parent=59 // pred_region
          %539 = dma.done [#allocation12], 512
        $region88: #{tpu_custom_call.1} parent=59 // pred_fallthru
          _
        // Predicated region
        $region89: #{tpu_custom_call.1} parent=59 // pred_check
          %p540 = pneg %p256
        $region90: #{tpu_custom_call.1} parent=59 // pred_check_branch
          %542 = sbr.rel (%p540) target = $region92
        $region91: #{tpu_custom_call.1} parent=59 // pred_region
          %543 = dma.done [#allocation15], 512
        $region92: #{tpu_custom_call.1} parent=59 // pred_fallthru
          _
        %s544 = sand.u32 %s45, 1
        %s545 = scalar_lea.sflag [#allocation3], %s544
        %s546 = sand.u32 %s45, 1
        %s547 = smul.addr %s546, 8
        %s548 = scalar_lea.vmem [#allocation2], %s547
        %p549 = pneg %p58
        %p550 = pneg %p55
        %s551 = sand.u32 %s37, 1
        %s552 = scalar_lea.sflag [#allocation6], %s551
        %s553 = sand.u32 %s71, 1
        %s554 = smul.addr %s553, 8
        %s555 = scalar_lea.vmem [#allocation5], %s554
        %p556 = pneg %p84
        %p557 = pneg %p81
        %s558 = sand.u32 %s37, 1
        %s559 = scalar_lea.sflag [#allocation6], %s558
        %s560 = sand.u32 %s97, 1
        %s561 = smul.addr %s560, 16
        %s562 = scalar_lea.vmem [#allocation7], %s561
        %p563 = pneg %p110
        %p564 = pneg %p107
        %s565 = sand.u32 %s37, 1
        %s566 = scalar_lea.sflag [#allocation9], %s565
        %s567 = sand.u32 %s123, 1
        %s568 = smul.addr %s567, 16
        %s569 = scalar_lea.vmem [#allocation8], %s568
        %p570 = pneg %p136
        %p571 = pneg %p133
        %s572 = sand.u32 %s37, 1
        %s573 = scalar_lea.sflag [#allocation9], %s572
        %s574 = sand.u32 %s149, 1
        %s575 = smul.addr %s574, 16
        %s576 = scalar_lea.vmem [#allocation10], %s575
        %p577 = pneg %p162
        %p578 = pneg %p159
        %s579 = sand.u32 %s37, 1
        %s580 = scalar_lea.sflag [#allocation12], %s579
        %s581 = sand.u32 %s175, 1
        %s582 = smul.addr %s581, 4
        %s583 = scalar_lea.vmem [#allocation11], %s582
        %p584 = pneg %p188
        %p585 = pneg %p185
        %p586 = scmp.lt.s32.totalorder %s37, 1
        %s587 = scalar_select %p586, %s37, 1
        %s588 = smul.addr %s587, 8
        %s589 = scalar_lea.vmem %s6, %s588
        %p590 = pneg %p214
        %p591 = pneg %p211
        %p592 = pneg %p235
        %p593 = pneg %p232
        %p594 = pneg %p256
        %p595 = pneg %p253
        %p596 = pneg %p277
        %p597 = pneg %p274
        %p598 = pneg %p303
        %p599 = pneg %p300
        %s600 = sand.u32 %s290, 1
        %s601 = scalar_lea.sflag [#allocation4], %s600
        %s602 = sand.u32 %s290, 1
        %s603 = smul.addr %s602, 8
        %s604 = scalar_lea.vmem [#allocation16], %s603
        %p605 = scmp.lt.s32.totalorder %s37, 1
        %s606 = scalar_select %p605, %s37, 1
        %s607 = smul.addr %s606, 8
        %s608 = scalar_lea.vmem %s6, %s607
        %v610 = vld [vmem:[%s486] sm:$0xff]
        %v611 = vld [vmem:[#allocation13] sm:$0xff]
        %v612 = vld [vmem:[#allocation13 + $0x8] sm:$0xff]
        %v613 = vld [vmem:[#allocation13 + $0x10] sm:$0xff]
        %v614 = vld [vmem:[#allocation13 + $0x18] sm:$0xff]
        %v615 = vld [vmem:[%s495] sm:$0xff]
        %vm616 = vcmask 261120
        %v618 = vsel %vm616, %v610, 0
        %620 = vmatprep.subr.mxu0 0.0
        %621 = vmatpush1.msra.mxu0 %v611
        %622 = vmatprep.subr.mxu0 0.0
        %623 = vmatpush1.msra.mxu0 %v612
        %624 = vmatprep.subr.mxu0 0.0
        %625 = vmatpush1.msra.mxu0 %v613
        %626 = vmatprep.subr.mxu0 0.0
        %627 = vmatpush1.msra.mxu0 %v614
        %628 = vmatprep.subr.mxu0 0.0
        %629 = vmatpush1.msra.mxu0 0.0
        %630 = vmatprep.subr.mxu0 0.0
        %631 = vmatpush1.msra.mxu0 0.0
        %632 = vmatprep.subr.mxu0 0.0
        %633 = vmatpush1.msra.mxu0 0.0
        %634 = vmatprep.subr.mxu0 0.0
        %635 = vmatpush1.msra.mxu0 0.0
        %636 = vmatprep.subr.mxu0 0.0
        %637 = vmatpush1.msra.mxu0 0.0
        %638 = vmatprep.subr.mxu0 0.0
        %639 = vmatpush1.msra.mxu0 0.0
        %640 = vmatprep.subr.mxu0 0.0
        %641 = vmatpush1.msra.mxu0 0.0
        %642 = vmatprep.subr.mxu0 0.0
        %643 = vmatpush1.msra.mxu0 0.0
        %644 = vmatprep.subr.mxu0 0.0
        %645 = vmatpush1.msra.mxu0 0.0
        %646 = vmatprep.subr.mxu0 0.0
        %647 = vmatpush1.msra.mxu0 0.0
        %648 = vmatprep.subr.mxu0 0.0
        %649 = vmatpush1.msra.mxu0 0.0
        %650 = vmatprep.subr.mxu0 0.0
        %651 = vmatpush1.msra.mxu0 0.0
        %652 = vmatprep.subr.mxu0 0.0
        %653 = vmatpush1.msra.mxu0 0.0
        %654 = vmatprep.subr.mxu0 0.0
        %655 = vmatpush1.msra.mxu0 0.0
        %656 = vmatprep.subr.mxu0 0.0
        %657 = vmatpush1.msra.mxu0 0.0
        %658 = vmatprep.subr.mxu0 0.0
        %659 = vmatpush1.msra.mxu0 0.0
        %660 = vmatprep.subr.mxu0 0.0
        %661 = vmatpush1.msra.mxu0 0.0
        %662 = vmatprep.subr.mxu0 0.0
        %663 = vmatpush1.msra.mxu0 0.0
        %664 = vmatprep.subr.mxu0 0.0
        %665 = vmatpush1.msra.mxu0 0.0
        %666 = vmatprep.subr.mxu0 0.0
        %667 = vmatpush1.msra.mxu0 0.0
        %668 = vmatprep.subr.mxu0 0.0
        %669 = vmatpush1.msra.mxu0 0.0
        %670 = vmatprep.subr.mxu0 0.0
        %671 = vmatpush1.msra.mxu0 0.0
        %672 = vmatprep.subr.mxu0 0.0
        %673 = vmatpush1.msra.mxu0 0.0
        %674 = vmatprep.subr.mxu0 0.0
        %675 = vmatpush1.msra.mxu0 0.0
        %676 = vmatprep.subr.mxu0 0.0
        %677 = vmatpush1.msra.mxu0 0.0
        %678 = vmatprep.subr.mxu0 0.0
        %679 = vmatpush1.msra.mxu0 0.0
        %680 = vmatprep.subr.mxu0 0.0
        %681 = vmatpush1.msra.mxu0 0.0
        %682 = vmatprep.subr.mxu0 0.0
        %683 = vmatpush1.msra.mxu0 0.0
        %684 = vmatprep.mubr.f32.mxu0 0.0
        %685 = vmatmul.mubr.f32.gmra.mrb[0].mxu0 %v618
        %v686 = vpop.f32.mrb[0].mxu0
        %v687 = vadd.f32 %v615, %v686
        %v688 = vpop.f32.mrb[0].mxu0
        %689 = vdwg.mxu0
        %v690 = vld [vmem:[%s531] sm:$0xf]
        %v691 = vunpack.c.l.bf16 %v690
        %v692 = vpack.c.bf16 %v687, %v687
        %v693 = vld [vmem:[%s504] sm:$0xf]
        %vm694 = vcmask 64512
        %v696 = vsel %vm694, %v692, 0
        %vm698 = vcmask 1043456
        %v700 = vsel %vm698, %v693, 0
        %702 = vmatprep.subr.bf16.mxu0 0
        %703 = vmatpush1.bf16.msra.mxu0 %v700
        %704 = vmatprep.subr.bf16.mxu0 0
        %705 = vmatpush1.bf16.msra.mxu0 0
        %706 = vmatprep.subr.bf16.mxu0 0
        %707 = vmatpush1.bf16.msra.mxu0 0
        %708 = vmatprep.subr.bf16.mxu0 0
        %709 = vmatpush1.bf16.msra.mxu0 0
        %710 = vmatprep.subr.bf16.mxu0 0
        %711 = vmatpush1.bf16.msra.mxu0 0
        %712 = vmatprep.subr.bf16.mxu0 0
        %713 = vmatpush1.bf16.msra.mxu0 0
        %714 = vmatprep.subr.bf16.mxu0 0
        %715 = vmatpush1.bf16.msra.mxu0 0
        %716 = vmatprep.subr.bf16.mxu0 0
        %717 = vmatpush1.bf16.msra.mxu0 0
        %718 = vmatprep.subr.bf16.mxu0 0
        %719 = vmatpush1.bf16.msra.mxu0 0
        %720 = vmatprep.subr.bf16.mxu0 0
        %721 = vmatpush1.bf16.msra.mxu0 0
        %722 = vmatprep.subr.bf16.mxu0 0
        %723 = vmatpush1.bf16.msra.mxu0 0
        %724 = vmatprep.subr.bf16.mxu0 0
        %725 = vmatpush1.bf16.msra.mxu0 0
        %726 = vmatprep.subr.bf16.mxu0 0
        %727 = vmatpush1.bf16.msra.mxu0 0
        %728 = vmatprep.subr.bf16.mxu0 0
        %729 = vmatpush1.bf16.msra.mxu0 0
        %730 = vmatprep.subr.bf16.mxu0 0
        %731 = vmatpush1.bf16.msra.mxu0 0
        %732 = vmatprep.subr.bf16.mxu0 0
        %733 = vmatpush1.bf16.msra.mxu0 0
        %734 = vmatprep.mubr.bf16.mxu0 0
        %735 = vmatmul.mubr.bf16.gmra.mrb[0].mxu0 %v696
        %v736 = vpop.f32.mrb[0].mxu0
        %v737 = vadd.f32 0.0, %v736
        %v738 = vpop.f32.mrb[0].mxu0
        %v739 = vpop.f32.mrb[0].mxu0
        %v740 = vpop.f32.mrb[0].mxu0
        %741 = vdwg.mxu0
        %v742 = vmul.f32 %v737, 0.35355338
        %v743 = vadd.f32 %v742, %v691
        %744 = vmax.xlane.f32.xlu0 %v743
        %v745 = vpop.xlane.xlu0 %744
        %v746 = vsub.f32 %v743, %v745
        %v747 = vmul.f32 %v746, 1.442695
        %v748 = vpow.pop %v747
        %749 = vadd.xlane.f32.xlu0 %v748
        %v750 = vpop.xlane.xlu0 %749
        %v751 = vrcp.pop %v750
        %v752 = vmul.f32 %v748, %v751
        %v753 = vpack.c.bf16 %v752, %v752
        %v754 = vld [vmem:[%s513] sm:$0xf]
        %755 = vmatprep.subr.bf16.mxu0 0
        %756 = vmatpush1.bf16.xpose.msra.mxu0 %v754
        %757 = vmatprep.subr.bf16.mxu0 0
        %758 = vmatpush1.bf16.xpose.msra.mxu0 0
        %759 = vmatprep.subr.bf16.mxu0 0
        %760 = vmatpush1.bf16.xpose.msra.mxu0 0
        %761 = vmatprep.subr.bf16.mxu0 0
        %762 = vmatpush1.bf16.xpose.msra.mxu0 0
        %763 = vmatprep.subr.bf16.mxu0 0
        %764 = vmatpush1.bf16.xpose.msra.mxu0 0
        %765 = vmatprep.subr.bf16.mxu0 0
        %766 = vmatpush1.bf16.xpose.msra.mxu0 0
        %767 = vmatprep.subr.bf16.mxu0 0
        %768 = vmatpush1.bf16.xpose.msra.mxu0 0
        %769 = vmatprep.subr.bf16.mxu0 0
        %770 = vmatpush1.bf16.xpose.msra.mxu0 0
        %771 = vmatprep.subr.bf16.mxu0 0
        %772 = vmatpush1.bf16.xpose.msra.mxu0 0
        %773 = vmatprep.subr.bf16.mxu0 0
        %774 = vmatpush1.bf16.xpose.msra.mxu0 0
        %775 = vmatprep.subr.bf16.mxu0 0
        %776 = vmatpush1.bf16.xpose.msra.mxu0 0
        %777 = vmatprep.subr.bf16.mxu0 0
        %778 = vmatpush1.bf16.xpose.msra.mxu0 0
        %779 = vmatprep.subr.bf16.mxu0 0
        %780 = vmatpush1.bf16.xpose.msra.mxu0 0
        %781 = vmatprep.subr.bf16.mxu0 0
        %782 = vmatpush1.bf16.xpose.msra.mxu0 0
        %783 = vmatprep.subr.bf16.mxu0 0
        %784 = vmatpush1.bf16.xpose.msra.mxu0 0
        %785 = vmatprep.subr.bf16.mxu0 0
        %786 = vmatpush1.bf16.xpose.msra.mxu0 0
        %787 = vmatprep.mubr.bf16.mxu0 0
        %788 = vmatmul.mubr.bf16.gmra.mrb[0].mxu0 %v753
        %v789 = vpop.f32.mrb[0].mxu0
        %v790 = vadd.f32 0.0, %v789
        %v791 = vpop.f32.mrb[0].mxu0
        %v792 = vpop.f32.mrb[0].mxu0
        %v793 = vpop.f32.mrb[0].mxu0
        %794 = vdwg.mxu0
        %v795 = vld [vmem:[#allocation14] sm:$0xff]
        %s796 = scalar_lea.vmem %s504, 4 [#allocation7]
        %v797 = vld [vmem:[%s796] sm:$0xf]
        %799 = vrot.lane.b32.xlu0 %v692, 120
        %v800 = vpop.permute.xlu0 %799
        %v802 = vsel %vm694, %v800, 0
        %v805 = vsel %vm698, %v797, 0
        %807 = vmatprep.subr.bf16.mxu0 0
        %808 = vmatpush1.bf16.msra.mxu0 %v805
        %809 = vmatprep.subr.bf16.mxu0 0
        %810 = vmatpush1.bf16.msra.mxu0 0
        %811 = vmatprep.subr.bf16.mxu0 0
        %812 = vmatpush1.bf16.msra.mxu0 0
        %813 = vmatprep.subr.bf16.mxu0 0
        %814 = vmatpush1.bf16.msra.mxu0 0
        %815 = vmatprep.subr.bf16.mxu0 0
        %816 = vmatpush1.bf16.msra.mxu0 0
        %817 = vmatprep.subr.bf16.mxu0 0
        %818 = vmatpush1.bf16.msra.mxu0 0
        %819 = vmatprep.subr.bf16.mxu0 0
        %820 = vmatpush1.bf16.msra.mxu0 0
        %821 = vmatprep.subr.bf16.mxu0 0
        %822 = vmatpush1.bf16.msra.mxu0 0
        %823 = vmatprep.subr.bf16.mxu0 0
        %824 = vmatpush1.bf16.msra.mxu0 0
        %825 = vmatprep.subr.bf16.mxu0 0
        %826 = vmatpush1.bf16.msra.mxu0 0
        %827 = vmatprep.subr.bf16.mxu0 0
        %828 = vmatpush1.bf16.msra.mxu0 0
        %829 = vmatprep.subr.bf16.mxu0 0
        %830 = vmatpush1.bf16.msra.mxu0 0
        %831 = vmatprep.subr.bf16.mxu0 0
        %832 = vmatpush1.bf16.msra.mxu0 0
        %833 = vmatprep.subr.bf16.mxu0 0
        %834 = vmatpush1.bf16.msra.mxu0 0
        %835 = vmatprep.subr.bf16.mxu0 0
        %836 = vmatpush1.bf16.msra.mxu0 0
        %837 = vmatprep.subr.bf16.mxu0 0
        %838 = vmatpush1.bf16.msra.mxu0 0
        %839 = vmatprep.mubr.bf16.mxu0 0
        %840 = vmatmul.mubr.bf16.gmra.mrb[0].mxu0 %v802
        %v841 = vpop.f32.mrb[0].mxu0
        %v842 = vadd.f32 0.0, %v841
        %v843 = vpop.f32.mrb[0].mxu0
        %v844 = vpop.f32.mrb[0].mxu0
        %v845 = vpop.f32.mrb[0].mxu0
        %846 = vdwg.mxu0
        %v847 = vmul.f32 %v842, 0.35355338
        %v848 = vadd.f32 %v847, %v691
        %849 = vmax.xlane.f32.xlu0 %v848
        %v850 = vpop.xlane.xlu0 %849
        %v851 = vsub.f32 %v848, %v850
        %v852 = vmul.f32 %v851, 1.442695
        %v853 = vpow.pop %v852
        %854 = vadd.xlane.f32.xlu0 %v853
        %v855 = vpop.xlane.xlu0 %854
        %v856 = vrcp.pop %v855
        %v857 = vmul.f32 %v853, %v856
        %v858 = vpack.c.bf16 %v857, %v857
        %s859 = scalar_lea.vmem %s513, 4 [#allocation8]
        %v860 = vld [vmem:[%s859] sm:$0xf]
        %861 = vmatprep.subr.bf16.mxu0 0
        %862 = vmatpush1.bf16.xpose.msra.mxu0 %v860
        %863 = vmatprep.subr.bf16.mxu0 0
        %864 = vmatpush1.bf16.xpose.msra.mxu0 0
        %865 = vmatprep.subr.bf16.mxu0 0
        %866 = vmatpush1.bf16.xpose.msra.mxu0 0
        %867 = vmatprep.subr.bf16.mxu0 0
        %868 = vmatpush1.bf16.xpose.msra.mxu0 0
        %869 = vmatprep.subr.bf16.mxu0 0
        %870 = vmatpush1.bf16.xpose.msra.mxu0 0
        %871 = vmatprep.subr.bf16.mxu0 0
        %872 = vmatpush1.bf16.xpose.msra.mxu0 0
        %873 = vmatprep.subr.bf16.mxu0 0
        %874 = vmatpush1.bf16.xpose.msra.mxu0 0
        %875 = vmatprep.subr.bf16.mxu0 0
        %876 = vmatpush1.bf16.xpose.msra.mxu0 0
        %877 = vmatprep.subr.bf16.mxu0 0
        %878 = vmatpush1.bf16.xpose.msra.mxu0 0
        %879 = vmatprep.subr.bf16.mxu0 0
        %880 = vmatpush1.bf16.xpose.msra.mxu0 0
        %881 = vmatprep.subr.bf16.mxu0 0
        %882 = vmatpush1.bf16.xpose.msra.mxu0 0
        %883 = vmatprep.subr.bf16.mxu0 0
        %884 = vmatpush1.bf16.xpose.msra.mxu0 0
        %885 = vmatprep.subr.bf16.mxu0 0
        %886 = vmatpush1.bf16.xpose.msra.mxu0 0
        %887 = vmatprep.subr.bf16.mxu0 0
        %888 = vmatpush1.bf16.xpose.msra.mxu0 0
        %889 = vmatprep.subr.bf16.mxu0 0
        %890 = vmatpush1.bf16.xpose.msra.mxu0 0
        %891 = vmatprep.subr.bf16.mxu0 0
        %892 = vmatpush1.bf16.xpose.msra.mxu0 0
        %893 = vmatprep.mubr.bf16.mxu0 0
        %894 = vmatmul.mubr.bf16.gmra.mrb[0].mxu0 %v858
        %v895 = vpop.f32.mrb[0].mxu0
        %v896 = vadd.f32 0.0, %v895
        %v897 = vpop.f32.mrb[0].mxu0
        %v898 = vpop.f32.mrb[0].mxu0
        %v899 = vpop.f32.mrb[0].mxu0
        %900 = vdwg.mxu0
        %v901 = vld [vmem:[#allocation14 + $0x8] sm:$0xff]
        %v903 = vsel %vm694, %v896, 0
        %905 = vmatprep.subr.mxu0 0.0
        %906 = vmatpush1.msra.mxu0 %v901
        %907 = vmatprep.subr.mxu0 0.0
        %908 = vmatpush1.msra.mxu0 0.0
        %909 = vmatprep.subr.mxu0 0.0
        %910 = vmatpush1.msra.mxu0 0.0
        %911 = vmatprep.subr.mxu0 0.0
        %912 = vmatpush1.msra.mxu0 0.0
        %913 = vmatprep.subr.mxu0 0.0
        %914 = vmatpush1.msra.mxu0 0.0
        %915 = vmatprep.subr.mxu0 0.0
        %916 = vmatpush1.msra.mxu0 0.0
        %917 = vmatprep.subr.mxu0 0.0
        %918 = vmatpush1.msra.mxu0 0.0
        %919 = vmatprep.subr.mxu0 0.0
        %920 = vmatpush1.msra.mxu0 0.0
        %921 = vmatprep.subr.mxu0 0.0
        %922 = vmatpush1.msra.mxu0 0.0
        %923 = vmatprep.subr.mxu0 0.0
        %924 = vmatpush1.msra.mxu0 0.0
        %925 = vmatprep.subr.mxu0 0.0
        %926 = vmatpush1.msra.mxu0 0.0
        %927 = vmatprep.subr.mxu0 0.0
        %928 = vmatpush1.msra.mxu0 0.0
        %929 = vmatprep.subr.mxu0 0.0
        %930 = vmatpush1.msra.mxu0 0.0
        %931 = vmatprep.subr.mxu0 0.0
        %932 = vmatpush1.msra.mxu0 0.0
        %933 = vmatprep.subr.mxu0 0.0
        %934 = vmatpush1.msra.mxu0 0.0
        %935 = vmatprep.subr.mxu0 0.0
        %936 = vmatpush1.msra.mxu0 0.0
        %937 = vmatprep.subr.mxu0 0.0
        %938 = vmatpush1.msra.mxu0 0.0
        %939 = vmatprep.subr.mxu0 0.0
        %940 = vmatpush1.msra.mxu0 0.0
        %941 = vmatprep.subr.mxu0 0.0
        %942 = vmatpush1.msra.mxu0 0.0
        %943 = vmatprep.subr.mxu0 0.0
        %944 = vmatpush1.msra.mxu0 0.0
        %945 = vmatprep.subr.mxu0 0.0
        %946 = vmatpush1.msra.mxu0 0.0
        %947 = vmatprep.subr.mxu0 0.0
        %948 = vmatpush1.msra.mxu0 0.0
        %949 = vmatprep.subr.mxu0 0.0
        %950 = vmatpush1.msra.mxu0 0.0
        %951 = vmatprep.subr.mxu0 0.0
        %952 = vmatpush1.msra.mxu0 0.0
        %953 = vmatprep.subr.mxu0 0.0
        %954 = vmatpush1.msra.mxu0 0.0
        %955 = vmatprep.subr.mxu0 0.0
        %956 = vmatpush1.msra.mxu0 0.0
        %957 = vmatprep.subr.mxu0 0.0
        %958 = vmatpush1.msra.mxu0 0.0
        %959 = vmatprep.subr.mxu0 0.0
        %960 = vmatpush1.msra.mxu0 0.0
        %961 = vmatprep.subr.mxu0 0.0
        %962 = vmatpush1.msra.mxu0 0.0
        %963 = vmatprep.subr.mxu0 0.0
        %964 = vmatpush1.msra.mxu0 0.0
        %965 = vmatprep.subr.mxu0 0.0
        %966 = vmatpush1.msra.mxu0 0.0
        %967 = vmatprep.subr.mxu0 0.0
        %968 = vmatpush1.msra.mxu0 0.0
        %969 = vmatprep.mubr.f32.mxu0 0.0
        %970 = vmatmul.mubr.f32.gmra.mrb[0].mxu0 %v903
        %v971 = vpop.f32.mrb[0].mxu0
        %v972 = vadd.f32 0.0, %v971
        %v973 = vpop.f32.mrb[0].mxu0
        %974 = vdwg.mxu0
        %v976 = vsel %vm694, %v790, 0
        %978 = vmatprep.subr.mxu0 0.0
        %979 = vmatpush1.msra.mxu0 %v795
        %980 = vmatprep.subr.mxu0 0.0
        %981 = vmatpush1.msra.mxu0 0.0
        %982 = vmatprep.subr.mxu0 0.0
        %983 = vmatpush1.msra.mxu0 0.0
        %984 = vmatprep.subr.mxu0 0.0
        %985 = vmatpush1.msra.mxu0 0.0
        %986 = vmatprep.subr.mxu0 0.0
        %987 = vmatpush1.msra.mxu0 0.0
        %988 = vmatprep.subr.mxu0 0.0
        %989 = vmatpush1.msra.mxu0 0.0
        %990 = vmatprep.subr.mxu0 0.0
        %991 = vmatpush1.msra.mxu0 0.0
        %992 = vmatprep.subr.mxu0 0.0
        %993 = vmatpush1.msra.mxu0 0.0
        %994 = vmatprep.subr.mxu0 0.0
        %995 = vmatpush1.msra.mxu0 0.0
        %996 = vmatprep.subr.mxu0 0.0
        %997 = vmatpush1.msra.mxu0 0.0
        %998 = vmatprep.subr.mxu0 0.0
        %999 = vmatpush1.msra.mxu0 0.0
        %1000 = vmatprep.subr.mxu0 0.0
        %1001 = vmatpush1.msra.mxu0 0.0
        %1002 = vmatprep.subr.mxu0 0.0
        %1003 = vmatpush1.msra.mxu0 0.0
        %1004 = vmatprep.subr.mxu0 0.0
        %1005 = vmatpush1.msra.mxu0 0.0
        %1006 = vmatprep.subr.mxu0 0.0
        %1007 = vmatpush1.msra.mxu0 0.0
        %1008 = vmatprep.subr.mxu0 0.0
        %1009 = vmatpush1.msra.mxu0 0.0
        %1010 = vmatprep.subr.mxu0 0.0
        %1011 = vmatpush1.msra.mxu0 0.0
        %1012 = vmatprep.subr.mxu0 0.0
        %1013 = vmatpush1.msra.mxu0 0.0
        %1014 = vmatprep.subr.mxu0 0.0
        %1015 = vmatpush1.msra.mxu0 0.0
        %1016 = vmatprep.subr.mxu0 0.0
        %1017 = vmatpush1.msra.mxu0 0.0
        %1018 = vmatprep.subr.mxu0 0.0
        %1019 = vmatpush1.msra.mxu0 0.0
        %1020 = vmatprep.subr.mxu0 0.0
        %1021 = vmatpush1.msra.mxu0 0.0
        %1022 = vmatprep.subr.mxu0 0.0
        %1023 = vmatpush1.msra.mxu0 0.0
        %1024 = vmatprep.subr.mxu0 0.0
        %1025 = vmatpush1.msra.mxu0 0.0
        %1026 = vmatprep.subr.mxu0 0.0
        %1027 = vmatpush1.msra.mxu0 0.0
        %1028 = vmatprep.subr.mxu0 0.0
        %1029 = vmatpush1.msra.mxu0 0.0
        %1030 = vmatprep.subr.mxu0 0.0
        %1031 = vmatpush1.msra.mxu0 0.0
        %1032 = vmatprep.subr.mxu0 0.0
        %1033 = vmatpush1.msra.mxu0 0.0
        %1034 = vmatprep.subr.mxu0 0.0
        %1035 = vmatpush1.msra.mxu0 0.0
        %1036 = vmatprep.subr.mxu0 0.0
        %1037 = vmatpush1.msra.mxu0 0.0
        %1038 = vmatprep.subr.mxu0 0.0
        %1039 = vmatpush1.msra.mxu0 0.0
        %1040 = vmatprep.subr.mxu0 0.0
        %1041 = vmatpush1.msra.mxu0 0.0
        %1042 = vmatprep.mubr.f32.mxu0 0.0
        %1043 = vmatmul.mubr.f32.gmra.mrb[0].mxu0 %v976
        %v1044 = vpop.f32.mrb[0].mxu0
        %v1045 = vadd.f32 %v972, %v1044
        %v1046 = vpop.f32.mrb[0].mxu0
        %1047 = vdwg.mxu0
        %s1048 = scalar_lea.vmem %s504, 8 [#allocation7]
        %v1049 = vld [vmem:[%s1048] sm:$0xf]
        %1050 = vrot.lane.b32.xlu0 %v692, 112
        %v1051 = vpop.permute.xlu0 %1050
        %v1053 = vsel %vm694, %v1051, 0
        %v1056 = vsel %vm698, %v1049, 0
        %1058 = vmatprep.subr.bf16.mxu0 0
        %1059 = vmatpush1.bf16.msra.mxu0 %v1056
        %1060 = vmatprep.subr.bf16.mxu0 0
        %1061 = vmatpush1.bf16.msra.mxu0 0
        %1062 = vmatprep.subr.bf16.mxu0 0
        %1063 = vmatpush1.bf16.msra.mxu0 0
        %1064 = vmatprep.subr.bf16.mxu0 0
        %1065 = vmatpush1.bf16.msra.mxu0 0
        %1066 = vmatprep.subr.bf16.mxu0 0
        %1067 = vmatpush1.bf16.msra.mxu0 0
        %1068 = vmatprep.subr.bf16.mxu0 0
        %1069 = vmatpush1.bf16.msra.mxu0 0
        %1070 = vmatprep.subr.bf16.mxu0 0
        %1071 = vmatpush1.bf16.msra.mxu0 0
        %1072 = vmatprep.subr.bf16.mxu0 0
        %1073 = vmatpush1.bf16.msra.mxu0 0
        %1074 = vmatprep.subr.bf16.mxu0 0
        %1075 = vmatpush1.bf16.msra.mxu0 0
        %1076 = vmatprep.subr.bf16.mxu0 0
        %1077 = vmatpush1.bf16.msra.mxu0 0
        %1078 = vmatprep.subr.bf16.mxu0 0
        %1079 = vmatpush1.bf16.msra.mxu0 0
        %1080 = vmatprep.subr.bf16.mxu0 0
        %1081 = vmatpush1.bf16.msra.mxu0 0
        %1082 = vmatprep.subr.bf16.mxu0 0
        %1083 = vmatpush1.bf16.msra.mxu0 0
        %1084 = vmatprep.subr.bf16.mxu0 0
        %1085 = vmatpush1.bf16.msra.mxu0 0
        %1086 = vmatprep.subr.bf16.mxu0 0
        %1087 = vmatpush1.bf16.msra.mxu0 0
        %1088 = vmatprep.subr.bf16.mxu0 0
        %1089 = vmatpush1.bf16.msra.mxu0 0
        %1090 = vmatprep.mubr.bf16.mxu0 0
        %1091 = vmatmul.mubr.bf16.gmra.mrb[0].mxu0 %v1053
        %v1092 = vpop.f32.mrb[0].mxu0
        %v1093 = vadd.f32 0.0, %v1092
        %v1094 = vpop.f32.mrb[0].mxu0
        %v1095 = vpop.f32.mrb[0].mxu0
        %v1096 = vpop.f32.mrb[0].mxu0
        %1097 = vdwg.mxu0
        %v1098 = vmul.f32 %v1093, 0.35355338
        %v1099 = vadd.f32 %v1098, %v691
        %1100 = vmax.xlane.f32.xlu0 %v1099
        %v1101 = vpop.xlane.xlu0 %1100
        %v1102 = vsub.f32 %v1099, %v1101
        %v1103 = vmul.f32 %v1102, 1.442695
        %v1104 = vpow.pop %v1103
        %1105 = vadd.xlane.f32.xlu0 %v1104
        %v1106 = vpop.xlane.xlu0 %1105
        %v1107 = vrcp.pop %v1106
        %v1108 = vmul.f32 %v1104, %v1107
        %v1109 = vpack.c.bf16 %v1108, %v1108
        %s1110 = scalar_lea.vmem %s513, 8 [#allocation8]
        %v1111 = vld [vmem:[%s1110] sm:$0xf]
        %1112 = vmatprep.subr.bf16.mxu0 0
        %1113 = vmatpush1.bf16.xpose.msra.mxu0 %v1111
        %1114 = vmatprep.subr.bf16.mxu0 0
        %1115 = vmatpush1.bf16.xpose.msra.mxu0 0
        %1116 = vmatprep.subr.bf16.mxu0 0
        %1117 = vmatpush1.bf16.xpose.msra.mxu0 0
        %1118 = vmatprep.subr.bf16.mxu0 0
        %1119 = vmatpush1.bf16.xpose.msra.mxu0 0
        %1120 = vmatprep.subr.bf16.mxu0 0
        %1121 = vmatpush1.bf16.xpose.msra.mxu0 0
        %1122 = vmatprep.subr.bf16.mxu0 0
        %1123 = vmatpush1.bf16.xpose.msra.mxu0 0
        %1124 = vmatprep.subr.bf16.mxu0 0
        %1125 = vmatpush1.bf16.xpose.msra.mxu0 0
        %1126 = vmatprep.subr.bf16.mxu0 0
        %1127 = vmatpush1.bf16.xpose.msra.mxu0 0
        %1128 = vmatprep.subr.bf16.mxu0 0
        %1129 = vmatpush1.bf16.xpose.msra.mxu0 0
        %1130 = vmatprep.subr.bf16.mxu0 0
        %1131 = vmatpush1.bf16.xpose.msra.mxu0 0
        %1132 = vmatprep.subr.bf16.mxu0 0
        %1133 = vmatpush1.bf16.xpose.msra.mxu0 0
        %1134 = vmatprep.subr.bf16.mxu0 0
        %1135 = vmatpush1.bf16.xpose.msra.mxu0 0
        %1136 = vmatprep.subr.bf16.mxu0 0
        %1137 = vmatpush1.bf16.xpose.msra.mxu0 0
        %1138 = vmatprep.subr.bf16.mxu0 0
        %1139 = vmatpush1.bf16.xpose.msra.mxu0 0
        %1140 = vmatprep.subr.bf16.mxu0 0
        %1141 = vmatpush1.bf16.xpose.msra.mxu0 0
        %1142 = vmatprep.subr.bf16.mxu0 0
        %1143 = vmatpush1.bf16.xpose.msra.mxu0 0
        %1144 = vmatprep.mubr.bf16.mxu0 0
        %1145 = vmatmul.mubr.bf16.gmra.mrb[0].mxu0 %v1109
        %v1146 = vpop.f32.mrb[0].mxu0
        %v1147 = vadd.f32 0.0, %v1146
        %v1148 = vpop.f32.mrb[0].mxu0
        %v1149 = vpop.f32.mrb[0].mxu0
        %v1150 = vpop.f32.mrb[0].mxu0
        %1151 = vdwg.mxu0
        %v1152 = vld [vmem:[#allocation14 + $0x10] sm:$0xff]
        %v1154 = vsel %vm694, %v1147, 0
        %1156 = vmatprep.subr.mxu0 0.0
        %1157 = vmatpush1.msra.mxu0 %v1152
        %1158 = vmatprep.subr.mxu0 0.0
        %1159 = vmatpush1.msra.mxu0 0.0
        %1160 = vmatprep.subr.mxu0 0.0
        %1161 = vmatpush1.msra.mxu0 0.0
        %1162 = vmatprep.subr.mxu0 0.0
        %1163 = vmatpush1.msra.mxu0 0.0
        %1164 = vmatprep.subr.mxu0 0.0
        %1165 = vmatpush1.msra.mxu0 0.0
        %1166 = vmatprep.subr.mxu0 0.0
        %1167 = vmatpush1.msra.mxu0 0.0
        %1168 = vmatprep.subr.mxu0 0.0
        %1169 = vmatpush1.msra.mxu0 0.0
        %1170 = vmatprep.subr.mxu0 0.0
        %1171 = vmatpush1.msra.mxu0 0.0
        %1172 = vmatprep.subr.mxu0 0.0
        %1173 = vmatpush1.msra.mxu0 0.0
        %1174 = vmatprep.subr.mxu0 0.0
        %1175 = vmatpush1.msra.mxu0 0.0
        %1176 = vmatprep.subr.mxu0 0.0
        %1177 = vmatpush1.msra.mxu0 0.0
        %1178 = vmatprep.subr.mxu0 0.0
        %1179 = vmatpush1.msra.mxu0 0.0
        %1180 = vmatprep.subr.mxu0 0.0
        %1181 = vmatpush1.msra.mxu0 0.0
        %1182 = vmatprep.subr.mxu0 0.0
        %1183 = vmatpush1.msra.mxu0 0.0
        %1184 = vmatprep.subr.mxu0 0.0
        %1185 = vmatpush1.msra.mxu0 0.0
        %1186 = vmatprep.subr.mxu0 0.0
        %1187 = vmatpush1.msra.mxu0 0.0
        %1188 = vmatprep.subr.mxu0 0.0
        %1189 = vmatpush1.msra.mxu0 0.0
        %1190 = vmatprep.subr.mxu0 0.0
        %1191 = vmatpush1.msra.mxu0 0.0
        %1192 = vmatprep.subr.mxu0 0.0
        %1193 = vmatpush1.msra.mxu0 0.0
        %1194 = vmatprep.subr.mxu0 0.0
        %1195 = vmatpush1.msra.mxu0 0.0
        %1196 = vmatprep.subr.mxu0 0.0
        %1197 = vmatpush1.msra.mxu0 0.0
        %1198 = vmatprep.subr.mxu0 0.0
        %1199 = vmatpush1.msra.mxu0 0.0
        %1200 = vmatprep.subr.mxu0 0.0
        %1201 = vmatpush1.msra.mxu0 0.0
        %1202 = vmatprep.subr.mxu0 0.0
        %1203 = vmatpush1.msra.mxu0 0.0
        %1204 = vmatprep.subr.mxu0 0.0
        %1205 = vmatpush1.msra.mxu0 0.0
        %1206 = vmatprep.subr.mxu0 0.0
        %1207 = vmatpush1.msra.mxu0 0.0
        %1208 = vmatprep.subr.mxu0 0.0
        %1209 = vmatpush1.msra.mxu0 0.0
        %1210 = vmatprep.subr.mxu0 0.0
        %1211 = vmatpush1.msra.mxu0 0.0
        %1212 = vmatprep.subr.mxu0 0.0
        %1213 = vmatpush1.msra.mxu0 0.0
        %1214 = vmatprep.subr.mxu0 0.0
        %1215 = vmatpush1.msra.mxu0 0.0
        %1216 = vmatprep.subr.mxu0 0.0
        %1217 = vmatpush1.msra.mxu0 0.0
        %1218 = vmatprep.subr.mxu0 0.0
        %1219 = vmatpush1.msra.mxu0 0.0
        %1220 = vmatprep.mubr.f32.mxu0 0.0
        %1221 = vmatmul.mubr.f32.gmra.mrb[0].mxu0 %v1154
        %v1222 = vpop.f32.mrb[0].mxu0
        %v1223 = vadd.f32 0.0, %v1222
        %v1224 = vpop.f32.mrb[0].mxu0
        %1225 = vdwg.mxu0
        %v1226 = vadd.f32 %v1045, %v1223
        %s1227 = scalar_lea.vmem %s504, 12 [#allocation7]
        %v1228 = vld [vmem:[%s1227] sm:$0xf]
        %1229 = vrot.lane.b32.xlu0 %v692, 104
        %v1230 = vpop.permute.xlu0 %1229
        %v1232 = vsel %vm694, %v1230, 0
        %v1235 = vsel %vm698, %v1228, 0
        %1237 = vmatprep.subr.bf16.mxu0 0
        %1238 = vmatpush1.bf16.msra.mxu0 %v1235
        %1239 = vmatprep.subr.bf16.mxu0 0
        %1240 = vmatpush1.bf16.msra.mxu0 0
        %1241 = vmatprep.subr.bf16.mxu0 0
        %1242 = vmatpush1.bf16.msra.mxu0 0
        %1243 = vmatprep.subr.bf16.mxu0 0
        %1244 = vmatpush1.bf16.msra.mxu0 0
        %1245 = vmatprep.subr.bf16.mxu0 0
        %1246 = vmatpush1.bf16.msra.mxu0 0
        %1247 = vmatprep.subr.bf16.mxu0 0
        %1248 = vmatpush1.bf16.msra.mxu0 0
        %1249 = vmatprep.subr.bf16.mxu0 0
        %1250 = vmatpush1.bf16.msra.mxu0 0
        %1251 = vmatprep.subr.bf16.mxu0 0
        %1252 = vmatpush1.bf16.msra.mxu0 0
        %1253 = vmatprep.subr.bf16.mxu0 0
        %1254 = vmatpush1.bf16.msra.mxu0 0
        %1255 = vmatprep.subr.bf16.mxu0 0
        %1256 = vmatpush1.bf16.msra.mxu0 0
        %1257 = vmatprep.subr.bf16.mxu0 0
        %1258 = vmatpush1.bf16.msra.mxu0 0
        %1259 = vmatprep.subr.bf16.mxu0 0
        %1260 = vmatpush1.bf16.msra.mxu0 0
        %1261 = vmatprep.subr.bf16.mxu0 0
        %1262 = vmatpush1.bf16.msra.mxu0 0
        %1263 = vmatprep.subr.bf16.mxu0 0
        %1264 = vmatpush1.bf16.msra.mxu0 0
        %1265 = vmatprep.subr.bf16.mxu0 0
        %1266 = vmatpush1.bf16.msra.mxu0 0
        %1267 = vmatprep.subr.bf16.mxu0 0
        %1268 = vmatpush1.bf16.msra.mxu0 0
        %1269 = vmatprep.mubr.bf16.mxu0 0
        %1270 = vmatmul.mubr.bf16.gmra.mrb[0].mxu0 %v1232
        %v1271 = vpop.f32.mrb[0].mxu0
        %v1272 = vadd.f32 0.0, %v1271
        %v1273 = vpop.f32.mrb[0].mxu0
        %v1274 = vpop.f32.mrb[0].mxu0
        %v1275 = vpop.f32.mrb[0].mxu0
        %1276 = vdwg.mxu0
        %v1277 = vmul.f32 %v1272, 0.35355338
        %v1278 = vadd.f32 %v1277, %v691
        %1279 = vmax.xlane.f32.xlu0 %v1278
        %v1280 = vpop.xlane.xlu0 %1279
        %v1281 = vsub.f32 %v1278, %v1280
        %v1282 = vmul.f32 %v1281, 1.442695
        %v1283 = vpow.pop %v1282
        %1284 = vadd.xlane.f32.xlu0 %v1283
        %v1285 = vpop.xlane.xlu0 %1284
        %v1286 = vrcp.pop %v1285
        %v1287 = vmul.f32 %v1283, %v1286
        %v1288 = vpack.c.bf16 %v1287, %v1287
        %s1289 = scalar_lea.vmem %s513, 12 [#allocation8]
        %v1290 = vld [vmem:[%s1289] sm:$0xf]
        %1291 = vmatprep.subr.bf16.mxu0 0
        %1292 = vmatpush1.bf16.xpose.msra.mxu0 %v1290
        %1293 = vmatprep.subr.bf16.mxu0 0
        %1294 = vmatpush1.bf16.xpose.msra.mxu0 0
        %1295 = vmatprep.subr.bf16.mxu0 0
        %1296 = vmatpush1.bf16.xpose.msra.mxu0 0
        %1297 = vmatprep.subr.bf16.mxu0 0
        %1298 = vmatpush1.bf16.xpose.msra.mxu0 0
        %1299 = vmatprep.subr.bf16.mxu0 0
        %1300 = vmatpush1.bf16.xpose.msra.mxu0 0
        %1301 = vmatprep.subr.bf16.mxu0 0
        %1302 = vmatpush1.bf16.xpose.msra.mxu0 0
        %1303 = vmatprep.subr.bf16.mxu0 0
        %1304 = vmatpush1.bf16.xpose.msra.mxu0 0
        %1305 = vmatprep.subr.bf16.mxu0 0
        %1306 = vmatpush1.bf16.xpose.msra.mxu0 0
        %1307 = vmatprep.subr.bf16.mxu0 0
        %1308 = vmatpush1.bf16.xpose.msra.mxu0 0
        %1309 = vmatprep.subr.bf16.mxu0 0
        %1310 = vmatpush1.bf16.xpose.msra.mxu0 0
        %1311 = vmatprep.subr.bf16.mxu0 0
        %1312 = vmatpush1.bf16.xpose.msra.mxu0 0
        %1313 = vmatprep.subr.bf16.mxu0 0
        %1314 = vmatpush1.bf16.xpose.msra.mxu0 0
        %1315 = vmatprep.subr.bf16.mxu0 0
        %1316 = vmatpush1.bf16.xpose.msra.mxu0 0
        %1317 = vmatprep.subr.bf16.mxu0 0
        %1318 = vmatpush1.bf16.xpose.msra.mxu0 0
        %1319 = vmatprep.subr.bf16.mxu0 0
        %1320 = vmatpush1.bf16.xpose.msra.mxu0 0
        %1321 = vmatprep.subr.bf16.mxu0 0
        %1322 = vmatpush1.bf16.xpose.msra.mxu0 0
        %1323 = vmatprep.mubr.bf16.mxu0 0
        %1324 = vmatmul.mubr.bf16.gmra.mrb[0].mxu0 %v1288
        %v1325 = vpop.f32.mrb[0].mxu0
        %v1326 = vadd.f32 0.0, %v1325
        %v1327 = vpop.f32.mrb[0].mxu0
        %v1328 = vpop.f32.mrb[0].mxu0
        %v1329 = vpop.f32.mrb[0].mxu0
        %1330 = vdwg.mxu0
        %v1331 = vld [vmem:[#allocation14 + $0x18] sm:$0xff]
        %v1333 = vsel %vm694, %v1326, 0
        %1335 = vmatprep.subr.mxu0 0.0
        %1336 = vmatpush1.msra.mxu0 %v1331
        %1337 = vmatprep.subr.mxu0 0.0
        %1338 = vmatpush1.msra.mxu0 0.0
        %1339 = vmatprep.subr.mxu0 0.0
        %1340 = vmatpush1.msra.mxu0 0.0
        %1341 = vmatprep.subr.mxu0 0.0
        %1342 = vmatpush1.msra.mxu0 0.0
        %1343 = vmatprep.subr.mxu0 0.0
        %1344 = vmatpush1.msra.mxu0 0.0
        %1345 = vmatprep.subr.mxu0 0.0
        %1346 = vmatpush1.msra.mxu0 0.0
        %1347 = vmatprep.subr.mxu0 0.0
        %1348 = vmatpush1.msra.mxu0 0.0
        %1349 = vmatprep.subr.mxu0 0.0
        %1350 = vmatpush1.msra.mxu0 0.0
        %1351 = vmatprep.subr.mxu0 0.0
        %1352 = vmatpush1.msra.mxu0 0.0
        %1353 = vmatprep.subr.mxu0 0.0
        %1354 = vmatpush1.msra.mxu0 0.0
        %1355 = vmatprep.subr.mxu0 0.0
        %1356 = vmatpush1.msra.mxu0 0.0
        %1357 = vmatprep.subr.mxu0 0.0
        %1358 = vmatpush1.msra.mxu0 0.0
        %1359 = vmatprep.subr.mxu0 0.0
        %1360 = vmatpush1.msra.mxu0 0.0
        %1361 = vmatprep.subr.mxu0 0.0
        %1362 = vmatpush1.msra.mxu0 0.0
        %1363 = vmatprep.subr.mxu0 0.0
        %1364 = vmatpush1.msra.mxu0 0.0
        %1365 = vmatprep.subr.mxu0 0.0
        %1366 = vmatpush1.msra.mxu0 0.0
        %1367 = vmatprep.subr.mxu0 0.0
        %1368 = vmatpush1.msra.mxu0 0.0
        %1369 = vmatprep.subr.mxu0 0.0
        %1370 = vmatpush1.msra.mxu0 0.0
        %1371 = vmatprep.subr.mxu0 0.0
        %1372 = vmatpush1.msra.mxu0 0.0
        %1373 = vmatprep.subr.mxu0 0.0
        %1374 = vmatpush1.msra.mxu0 0.0
        %1375 = vmatprep.subr.mxu0 0.0
        %1376 = vmatpush1.msra.mxu0 0.0
        %1377 = vmatprep.subr.mxu0 0.0
        %1378 = vmatpush1.msra.mxu0 0.0
        %1379 = vmatprep.subr.mxu0 0.0
        %1380 = vmatpush1.msra.mxu0 0.0
        %1381 = vmatprep.subr.mxu0 0.0
        %1382 = vmatpush1.msra.mxu0 0.0
        %1383 = vmatprep.subr.mxu0 0.0
        %1384 = vmatpush1.msra.mxu0 0.0
        %1385 = vmatprep.subr.mxu0 0.0
        %1386 = vmatpush1.msra.mxu0 0.0
        %1387 = vmatprep.subr.mxu0 0.0
        %1388 = vmatpush1.msra.mxu0 0.0
        %1389 = vmatprep.subr.mxu0 0.0
        %1390 = vmatpush1.msra.mxu0 0.0
        %1391 = vmatprep.subr.mxu0 0.0
        %1392 = vmatpush1.msra.mxu0 0.0
        %1393 = vmatprep.subr.mxu0 0.0
        %1394 = vmatpush1.msra.mxu0 0.0
        %1395 = vmatprep.subr.mxu0 0.0
        %1396 = vmatpush1.msra.mxu0 0.0
        %1397 = vmatprep.subr.mxu0 0.0
        %1398 = vmatpush1.msra.mxu0 0.0
        %1399 = vmatprep.mubr.f32.mxu0 0.0
        %1400 = vmatmul.mubr.f32.gmra.mrb[0].mxu0 %v1333
        %v1401 = vpop.f32.mrb[0].mxu0
        %v1402 = vadd.f32 0.0, %v1401
        %v1403 = vpop.f32.mrb[0].mxu0
        %1404 = vdwg.mxu0
        %v1405 = vadd.f32 %v1226, %v1402
        %v1406 = vld [vmem:[%s9] sm:$0x1]
        %v1408 = vlaneseq
        %v1409 = vshrl.u32 %v1408, 7
        %v1410 = vsub.s32 0, %v1409
        %v1411 = vrot.slane %v1406, %v1410
        %v1413 = vadd.f32 %v1405, %v1411
        %v1414 = vpack.c.bf16 %v1413, %v1413
        %v1415 = vld [vmem:[%s522] sm:$0xf]
        %v1416 = vld [vmem:[%s522 + $0x4] sm:$0xf]
        %v1417 = vld [vmem:[%s522 + $0x8] sm:$0xf]
        %v1418 = vld [vmem:[%s522 + $0xc] sm:$0xf]
        %v1423 = vunpack.c.l.b16 %v1415
        %v1424 = vunpack.c.l.b16 %v1416
        %v1425 = vunpack.c.l.b16 %v1417
        %v1426 = vunpack.c.l.b16 %v1418
        %v1427 = vpack.c.b16 %v1424, %v1423
        %v1428 = vpack.c.b16 %v1426, %v1425
        %v1432 = vsel %vm616, %v1414, 0
        %1434 = vmatprep.subr.bf16.mxu0 0
        %1435 = vmatpush1.bf16.msra.mxu0 %v1427
        %1436 = vmatprep.subr.bf16.mxu0 0
        %1437 = vmatpush1.bf16.msra.mxu0 %v1428
        %1438 = vmatprep.subr.bf16.mxu0 0
        %1439 = vmatpush1.bf16.msra.mxu0 0
        %1440 = vmatprep.subr.bf16.mxu0 0
        %1441 = vmatpush1.bf16.msra.mxu0 0
        %1442 = vmatprep.subr.bf16.mxu0 0
        %1443 = vmatpush1.bf16.msra.mxu0 0
        %1444 = vmatprep.subr.bf16.mxu0 0
        %1445 = vmatpush1.bf16.msra.mxu0 0
        %1446 = vmatprep.subr.bf16.mxu0 0
        %1447 = vmatpush1.bf16.msra.mxu0 0
        %1448 = vmatprep.subr.bf16.mxu0 0
        %1449 = vmatpush1.bf16.msra.mxu0 0
        %1450 = vmatprep.subr.bf16.mxu0 0
        %1451 = vmatpush1.bf16.msra.mxu0 0
        %1452 = vmatprep.subr.bf16.mxu0 0
        %1453 = vmatpush1.bf16.msra.mxu0 0
        %1454 = vmatprep.subr.bf16.mxu0 0
        %1455 = vmatpush1.bf16.msra.mxu0 0
        %1456 = vmatprep.subr.bf16.mxu0 0
        %1457 = vmatpush1.bf16.msra.mxu0 0
        %1458 = vmatprep.subr.bf16.mxu0 0
        %1459 = vmatpush1.bf16.msra.mxu0 0
        %1460 = vmatprep.subr.bf16.mxu0 0
        %1461 = vmatpush1.bf16.msra.mxu0 0
        %1462 = vmatprep.subr.bf16.mxu0 0
        %1463 = vmatpush1.bf16.msra.mxu0 0
        %1464 = vmatprep.subr.bf16.mxu0 0
        %1465 = vmatpush1.bf16.msra.mxu0 0
        %1466 = vmatprep.mubr.bf16.mxu0 0
        %1467 = vmatmul.mubr.bf16.gmra.mrb[0].mxu0 %v1432
        %v1468 = vpop.f32.mrb[0].mxu0
        %v1469 = vadd.f32 0.0, %v1468
        %v1470 = vpop.f32.mrb[0].mxu0
        %v1471 = vpop.f32.mrb[0].mxu0
        %v1472 = vpop.f32.mrb[0].mxu0
        %1473 = vdwg.mxu0
        %v1474 = vmul.f32 %v1469, 0.17677669
        %v1475 = vld [vmem:[%s608] sm:$0xff]
        %v1476 = vadd.f32 %v1474, %v1475
        %v1477 = vtanh.pop %v1476
        %v1478 = vmul.f32 %v1477, 10.0
        %v1479 = vadd.f32 %v1478, %v691
        %v1480 = vmul.f32 %v1479, 1.442695
        %v1481 = vpow.pop %v1480
        %1482 = vadd.xlane.f32.xlu0 %v1481
        %v1483 = vpop.xlane.xlu0 %1482
        %v1484 = vrcp.pop %v1483
        %v1485 = vmul.f32 %v1481, %v1484
        %1486 = vst [vmem:[%s604] sm:$0xff] %v1485
        %s1487 = sand.u32 %s290, 1
        %s1488 = scalar_lea.sflag [#allocation4], %s1487
        %s1489 = sand.u32 %s290, 1
        %s1490 = smul.addr %s1489, 8
        %s1491 = scalar_lea.vmem [#allocation16], %s1490
        // Predicated region
        $region93: #{tpu_custom_call.1} parent=59 // pred_check
          %p1492 = pneg %p300
        $region94: #{tpu_custom_call.1} parent=59 // pred_check_branch
          %1494 = sbr.rel (%p1492) target = $region96
        $region95: #{tpu_custom_call.1} parent=59 // pred_region
          %s1496 = ssub.s32 128, 128
          %1497 = vsyncadd %s1488, %s1496
          %s1498 = smul.addr %s37, 128
          %s1499 = scalar_lea.hbm %s10, %s1498
          %s1501 = sshll.u32 %s1491, 4
          %s1502 = int_to_ptr.vmem [resolvable:$true] %s1501
          %1504 = dma.vmem_to_hbm [thread:$0]  %s1502, 128, %s1499, %s1488
        $region96: #{tpu_custom_call.1} parent=59 // pred_fallthru
          _
      $region60: #{tpu_custom_call.1} parent=5 // pred_fallthru
        _
      %p1505 = scmp.le.s32.totalorder 2, %s32
      // Predicated region
      $region97: #{tpu_custom_call.1} parent=5 // pred_check
        %p1506 = pneg %p1505
      $region98: #{tpu_custom_call.1} parent=5 // pred_check_branch
        %1508 = sbr.rel (%p1506) target = $region100
      $region99: #{tpu_custom_call.1} parent=5 // pred_region
        %s1509 = ssub.s32 %s32, 2
        // Predicated region
        $region101: #{tpu_custom_call.1} parent=99 // pred_check
          %p1510 = pneg %p306
        $region102: #{tpu_custom_call.1} parent=99 // pred_check_branch
          %1512 = sbr.rel (%p1510) target = $region104
        $region103: #{tpu_custom_call.1} parent=99 // pred_region
          %s1513 = sand.u32 %s291, 1
          %s1514 = scalar_lea.sflag [#allocation4], %s1513
          %s1515 = sand.u32 %s291, 1
          %s1516 = smul.addr %s1515, 8
          %s1517 = scalar_lea.vmem [#allocation16], %s1516
          %1518 = dma.done %s1514, 128
        $region104: #{tpu_custom_call.1} parent=99 // pred_fallthru
          _
      $region100: #{tpu_custom_call.1} parent=5 // pred_fallthru
        _
    $region6: #{tpu_custom_call.1} parent=1 // loop_footer
      %s36 = sadd.s32 1, %s32
    $region7: #{tpu_custom_call.1} parent=1 // loop_footer_branch
      %31 = sbr.rel target = $region3
    $region8: #{tpu_custom_call.1} parent=1 // loop_exit
      _
    %1519 = vsyncpa [#allocation3], 1
    %s1520 = scalar_lea.sflag [#allocation3], 1
    %1521 = vsyncpa %s1520, 1
    %1522 = vsyncpa [#allocation6], 1
    %s1523 = scalar_lea.sflag [#allocation6], 1
    %1524 = vsyncpa %s1523, 1
    %1525 = vsyncpa [#allocation9], 1
    %s1526 = scalar_lea.sflag [#allocation9], 1
    %1527 = vsyncpa %s1526, 1
    %1528 = vsyncpa [#allocation12], 1
    %s1529 = scalar_lea.sflag [#allocation12], 1
    %1530 = vsyncpa %s1529, 1
    %1531 = vsyncpa [#allocation15], 1
    %1532 = vsyncpa [#allocation4], 1
    %s1533 = scalar_lea.sflag [#allocation4], 1
    %1534 = vsyncpa %s1533, 1

</llo_original>
